<compile_context>
chip_gen: v6e
topology: v6e:2x2x1
jax: 0.10.0
libtpu: 0.0.40
codegen_flags: <defaults>
</compile_context>

<pallas_src>
import functools

import jax
import jax.numpy as jnp
from jax.experimental import pallas as pl
from jax.experimental.pallas import tpu as pltpu


def _round_up(x, m):
    return (x + m - 1) // m * m


def _choose_bblk(batch):
    """Images per conv grid step: amortize the ~0.35us/step overhead but keep
    >=2 grid steps when possible so both v7x TensorCores get work (no-op on
    the single-TC v5e/v6e)."""
    for cand in (8, 4, 2):
        if batch % cand == 0 and batch // cand >= 2:
            return cand
    return 1


# ----------------------------- Pallas kernels ------------------------------

def conv_relu_meanpool_kernel(x_ref, w_ref, b_ref, m_ref, o_ref,
                              *, bblk, Qp, Wp, K, kdim):
    """Fused Conv2d(k=K, stride=1, pad=1) + ReLU + spatial mean, bblk images.

    x_ref: [bblk, Npad, Cin_pad]   zero-padded NHWC images, flattened (bf16)
    w_ref: [kdim_p, Cout_pad]      tap-gathered conv weight (bf16); row
                                   t*Cin_pad + c <-> (tap t, input channel c)
    b_ref: [1, Cout_pad]           conv bias (f32)
    m_ref: [Qp, 1]                 valid-row mask * 1/(H*W) (f32)
    o_ref: [bblk, Cout_pad]        mean over H*W of relu(conv(x)) (f32)

    A tap at offset (ki, kj) of the flattened padded image is the contiguous
    row slice x[d : d+Qp] with d = ki*Wp + kj.  The K*K tap slices are
    concatenated along lanes (zero-padded to kdim_p=128) and the whole step is
    ONE MXU matmul with f32 accumulation; the mask kills the Wp-W wrap rows
    and the Qp-Q pad rows before the pooled sum.
    """
    kdim_p, cout_p = w_ref.shape

    per_image = []
    for bi in range(bblk):
        taps = [x_ref[bi, pl.ds(ki * Wp + kj, Qp), :]
                for ki in range(K) for kj in range(K)]
        if kdim_p > kdim:
            taps.append(jnp.zeros((Qp, kdim_p - kdim), x_ref.dtype))
        per_image.append(jnp.concatenate(taps, axis=-1))         # [Qp, kdim_p]
    gathered = per_image[0] if bblk == 1 else jnp.concatenate(per_image, axis=0)

    acc = jnp.dot(gathered, w_ref[...],
                  preferred_element_type=jnp.float32)            # [bblk*Qp, Cout_pad]
    act = jnp.maximum(acc + b_ref[...], 0.0)
    act = act.reshape(bblk, Qp, cout_p) * m_ref[...][None, :, :]
    o_ref[...] = jnp.sum(act, axis=1)                            # [bblk, Cout_pad]


def vqa_head_kernel(v_ref, q_ref, wst_ref, bst_ref, wc_ref, bc_ref, o_ref,
                    *, hidden_p):
    """Fused VQA baseline head; every lane block is 128-aligned.

    v_ref:   [B, Cout_pad]               mean-pooled conv features (f32)
    q_ref:   [B, S, emb_p]               question word embeddings (f32)
    wst_ref: [Cout_pad + emb_p, 2*hidden_p]  block-diag stack of [Wv | Wq]
    bst_ref: [1, 2*hidden_p]             [bv | bq]
    wc_ref:  [hidden_p, A_pad]           classifier weight (zero-padded)
    bc_ref:  [1, A_pad]
    o_ref:   [B, A_pad]                  logits (cols >= A are zero)
    """
    q_mean = jnp.mean(q_ref[...], axis=1)                        # [B, emb_p]
    cat = jnp.concatenate([v_ref[...], q_mean], axis=-1)         # [B, 256]-aligned
    h = jnp.tanh(jnp.dot(cat, wst_ref[...],
                         preferred_element_type=jnp.float32) + bst_ref[...])
    fused = h[:, :hidden_p] * h[:, hidden_p:2 * hidden_p]        # whole vreg blocks
    o_ref[...] = (jnp.dot(fused, wc_ref[...],
                          preferred_element_type=jnp.float32) + bc_ref[...])


# ------------------------------ JAX wrappers --------------------------------

def shared_conv_layer(x_nchw, prep):
    """Conv2d(Cin,Cout,3,pad=1) + ReLU + spatial mean-pool, fused in Pallas.

    x_nchw: [B, Cin, H, W] (PyTorch NCHW).
    Returns pooled features [B, Cout_pad] f32 (cols >= Cout are exactly zero).
    """
    B, Cin, H, W = x_nchw.shape
    K = 3
    Hp, Wp = H + K - 1, W + K - 1
    Q = (H - 1) * Wp + W
    Qp = _round_up(Q, 8)
    d_max = (K - 1) * Wp + (K - 1)
    Npad = _round_up(d_max + Qp, 8)          # tap slices stay in-bounds
    cin_p = _round_up(Cin, 8)
    kdim = K * K * cin_p
    kdim_p, cout_p = prep["w_gather"].shape

    bblk = _choose_bblk(B)
    nb = B // bblk

    # per-input glue: NCHW -> NHWC, spatial zero-pad (conv pad=1), channel
    # pad, bf16 cast, flatten spatial, pad rows to Npad.
    x_nhwc = jnp.transpose(x_nchw, (0, 2, 3, 1))
    x_pad = jnp.pad(x_nhwc, ((0, 0), (1, 1), (1, 1), (0, cin_p - Cin)))
    x_flat = x_pad.astype(jnp.bfloat16).reshape(B, Hp * Wp, cin_p)
    x_flat = jnp.pad(x_flat, ((0, 0), (0, Npad - Hp * Wp), (0, 0)))

    kernel = functools.partial(conv_relu_meanpool_kernel,
                               bblk=bblk, Qp=Qp, Wp=Wp, K=K, kdim=kdim)
    flops = 2 * B * Qp * kdim_p * cout_p
    bytes_accessed = int(x_flat.size * 2 + nb * prep["w_gather"].size * 2
                         + nb * (cout_p + Qp) * 4 + B * cout_p * 4)

    pooled = pl.pallas_call(
        kernel,
        out_shape=jax.ShapeDtypeStruct((nb, bblk, cout_p), jnp.float32),
        grid_spec=pltpu.PrefetchScalarGridSpec(
            num_scalar_prefetch=0,
            grid=(nb,),
            in_specs=[
                pl.BlockSpec((bblk, Npad, cin_p), lambda b: (b, 0, 0)),
                pl.BlockSpec((kdim_p, cout_p), lambda b: (0, 0)),
                pl.BlockSpec((1, cout_p), lambda b: (0, 0)),
                pl.BlockSpec((Qp, 1), lambda b: (0, 0)),
            ],
            out_specs=pl.BlockSpec((None, bblk, cout_p), lambda b: (b, 0, 0)),
        ),
        compiler_params=pltpu.CompilerParams(
            dimension_semantics=("parallel",)),
        cost_estimate=pl.CostEstimate(
            flops=flops, transcendentals=0, bytes_accessed=bytes_accessed),
    )(x_flat, prep["w_gather"], prep["b_conv_row"], prep["mask"])

    return pooled.reshape(B, cout_p)


def model_vqa(v_pooled, input_q, prep, *, num_answers):
    """Baseline VQA head: pooled visual + mean word embedding fusion."""
    B = v_pooled.shape[0]
    seq = input_q.shape[1]
    hidden_p, a_p = prep["wc_pad"].shape
    kdim_head, hid2_p = prep["w_stack"].shape

    # TODO(synk): embedding row-gather has no clean Pallas equivalent at this
    # table size; keep it as an XLA gather feeding the head kernel.
    q_emb = jnp.take(prep["embed_pad"], input_q, axis=0)         # [B, S, emb_p]

    kernel = functools.partial(vqa_head_kernel, hidden_p=hidden_p)
    vmem = pl.BlockSpec(memory_space=pltpu.MemorySpace.VMEM)
    flops = 2 * B * (kdim_head * hid2_p + hidden_p * a_p) + B * seq * q_emb.shape[-1]
    bytes_accessed = int(4 * (v_pooled.size + q_emb.size + prep["w_stack"].size
                              + prep["b_stack"].size + prep["wc_pad"].size
                              + prep["bc_pad"].size + B * a_p))

    logits_pad = pl.pallas_call(
        kernel,
        out_shape=jax.ShapeDtypeStruct((B, a_p), jnp.float32),
        in_specs=[vmem] * 6,
        out_specs=vmem,
        cost_estimate=pl.CostEstimate(
            flops=flops, transcendentals=B * hid2_p,
            bytes_accessed=bytes_accessed),
    )(v_pooled, q_emb, prep["w_stack"], prep["b_stack"],
      prep["wc_pad"], prep["bc_pad"])

    return logits_pad[:, :num_answers]


def vqa_conv_abstract_forward(input_v, input_q, target_a, prep, *, num_answers):
    """Mirrors VQA_Conv_Abstract.forward (target_a is accepted but unused)."""
    del target_a
    v_pooled = shared_conv_layer(input_v, prep)
    answers = model_vqa(v_pooled, input_q, prep, num_answers=num_answers)
    return answers


# ------------------------------- parameters --------------------------------

def init_params(key, cin, cout, emb_dim, hidden, vocab_words, num_answers):
    ks = jax.random.split(key, 8)
    scale = 0.05
    return {
        "w_conv": scale * jax.random.normal(ks[0], (cout, cin, 3, 3), jnp.float32),
        "b_conv": scale * jax.random.normal(ks[1], (cout,), jnp.float32),
        "embed":  scale * jax.random.normal(ks[2], (vocab_words, emb_dim), jnp.float32),
        "wv":     scale * jax.random.normal(ks[3], (cout, hidden), jnp.float32),
        "bv":     scale * jax.random.normal(ks[4], (1, hidden), jnp.float32),
        "wq":     scale * jax.random.normal(ks[5], (emb_dim, hidden), jnp.float32),
        "bq":     scale * jax.random.normal(ks[6], (1, hidden), jnp.float32),
        "wc":     scale * jax.random.normal(ks[7], (hidden, num_answers), jnp.float32),
        "bc":     jnp.zeros((1, num_answers), jnp.float32),
    }


def prepare_params(params, *, H, W):
    """One-time parameter massaging (pads / relayouts / pooling mask), hoisted
    out of the jitted per-call forward."""
    K = 3
    Cout, Cin = params["w_conv"].shape[0], params["w_conv"].shape[1]
    cin_p = _round_up(Cin, 8)
    cout_p = _round_up(Cout, 128)
    kdim = K * K * cin_p
    # NOTE: with realistic Cin (K*K*Cin >= 128) pad toward 256 on v6e/v7x.
    kdim_p = _round_up(kdim, 128)

    # conv weight in tap-gathered layout: row t*cin_p + c <-> (tap t, chan c).
    w_t = jnp.transpose(params["w_conv"], (2, 3, 1, 0)).reshape(K * K, Cin, Cout)
    w_g = jnp.zeros((K * K, cin_p, cout_p), jnp.float32)
    w_g = w_g.at[:, :Cin, :Cout].set(w_t).reshape(kdim, cout_p)
    w_gather = jnp.pad(w_g, ((0, kdim_p - kdim), (0, 0))).astype(jnp.bfloat16)
    b_conv_row = jnp.zeros((1, cout_p), jnp.float32).at[0, :Cout].set(params["b_conv"])

    # valid-row mask (flattened-shift trick leaves Wp-W wrap rows per line and
    # Qp-Q pad rows), pre-scaled by 1/(H*W) so the masked sum is the mean.
    Wp = W + K - 1
    Q = (H - 1) * Wp + W
    Qp = _round_up(Q, 8)
    r = jnp.arange(Qp, dtype=jnp.int32)
    valid = (r < Q) & ((r % Wp) < W)
    mask = jnp.where(valid, 1.0 / (H * W), 0.0).astype(jnp.float32).reshape(Qp, 1)

    # head: pad every lane block to 128 so concat / gate / matmuls are aligned.
    emb = params["embed"].shape[1]
    hidden = params["wv"].shape[1]
    num_answers = params["wc"].shape[1]
    emb_p = _round_up(emb, 128)
    hidden_p = _round_up(hidden, 128)
    a_p = _round_up(num_answers, 128)

    embed_pad = jnp.pad(params["embed"], ((0, 0), (0, emb_p - emb)))
    w_stack = jnp.zeros((cout_p + emb_p, 2 * hidden_p), jnp.float32)
    w_stack = w_stack.at[:Cout, :hidden].set(params["wv"])
    w_stack = w_stack.at[cout_p:cout_p + emb, hidden_p:hidden_p + hidden].set(params["wq"])
    b_stack = jnp.zeros((1, 2 * hidden_p), jnp.float32)
    b_stack = b_stack.at[:, :hidden].set(params["bv"])
    b_stack = b_stack.at[:, hidden_p:hidden_p + hidden].set(params["bq"])
    wc_pad = jnp.zeros((hidden_p, a_p), jnp.float32).at[:hidden, :num_answers].set(params["wc"])
    bc_pad = jnp.zeros((1, a_p), jnp.float32).at[:, :num_answers].set(params["bc"])

    prep = {
        "w_gather": w_gather, "b_conv_row": b_conv_row, "mask": mask,
        "embed_pad": embed_pad, "w_stack": w_stack, "b_stack": b_stack,
        "wc_pad": wc_pad, "bc_pad": bc_pad,
    }
    return prep, num_answers


# ---------------------------------- main ------------------------------------

if __name__ == "__main__":
    key = jax.random.PRNGKey(0)
    k_v, k_q, k_a, k_p = jax.random.split(key, 4)

    B, Cin, H, W = 2, 4, 16, 16        # input_v: NCHW
    seq = 8
    Cout, emb_dim, hidden = 32, 32, 64
    vocab_words, num_answers = 50, 100

    input_v = jax.random.normal(k_v, (B, Cin, H, W), jnp.float32)
    input_q = jax.random.randint(k_q, (B, seq), 0, vocab_words, jnp.int32)
    target_a = jax.random.randint(k_a, (B,), 0, num_answers, jnp.int32)

    params = init_params(k_p, Cin, Cout, emb_dim, hidden, vocab_words, num_answers)
    prep, n_ans = prepare_params(params, H=H, W=W)

    fwd = jax.jit(functools.partial(vqa_conv_abstract_forward, num_answers=n_ans))
    answers = fwd(input_v, input_q, target_a, prep)
    answers = jax.block_until_ready(answers)

    assert answers.shape == (B, num_answers)
    assert bool(jnp.all(jnp.isfinite(answers)))
    print("KERNEL_OK")
</pallas_src>

<mosaic_0001>
module attributes {stable_mosaic.version = 11 : i64} {
  func.func @conv_relu_meanpool_kernel(%arg0: i32, %arg1: memref<1x328x8xbf16, #tpu.memory_space<vmem>>, %arg2: memref<128x128xbf16, #tpu.memory_space<vmem>>, %arg3: memref<1x128xf32, #tpu.memory_space<vmem>>, %arg4: memref<288x1xf32, #tpu.memory_space<vmem>>, %arg5: memref<1x1x128xf32, #tpu.memory_space<vmem>>) attributes {dimension_semantics = [#tpu.dimension_semantics<parallel>], iteration_bounds = array<i64: 2>, scalar_prefetch = 0 : i64, scratch_operands = 0 : i64, tpu.core_type = #tpu.core_type<tc>, window_params = [{transform_indices = @transform_0, window_bounds = array<i64: 1, 328, 8>}, {pipeline_mode = #tpu.pipeline_mode<synchronous>, transform_indices = @transform_1, window_bounds = array<i64: 128, 128>}, {pipeline_mode = #tpu.pipeline_mode<synchronous>, transform_indices = @transform_2, window_bounds = array<i64: 1, 128>}, {pipeline_mode = #tpu.pipeline_mode<synchronous>, transform_indices = @transform_3, window_bounds = array<i64: 288, 1>}, {transform_indices = @transform_4, window_bounds = array<i64: 1, 1, 128>}]} {
    %c0 = arith.constant 0 : index
    %c0_0 = arith.constant 0 : index
    %c0_1 = arith.constant 0 : index
    %0 = vector.load %arg1[%c0, %c0_0, %c0_1] : memref<1x328x8xbf16, #tpu.memory_space<vmem>>, vector<1x288x8xbf16>
    %1 = vector.shape_cast %0 : vector<1x288x8xbf16> to vector<288x8xbf16>
    %c0_2 = arith.constant 0 : index
    %c1 = arith.constant 1 : index
    %c0_3 = arith.constant 0 : index
    %2 = vector.load %arg1[%c0_2, %c1, %c0_3] : memref<1x328x8xbf16, #tpu.memory_space<vmem>>, vector<1x288x8xbf16>
    %3 = vector.shape_cast %2 : vector<1x288x8xbf16> to vector<288x8xbf16>
    %c0_4 = arith.constant 0 : index
    %c2 = arith.constant 2 : index
    %c0_5 = arith.constant 0 : index
    %4 = vector.load %arg1[%c0_4, %c2, %c0_5] : memref<1x328x8xbf16, #tpu.memory_space<vmem>>, vector<1x288x8xbf16>
    %5 = vector.shape_cast %4 : vector<1x288x8xbf16> to vector<288x8xbf16>
    %c0_6 = arith.constant 0 : index
    %c18 = arith.constant 18 : index
    %c0_7 = arith.constant 0 : index
    %6 = vector.load %arg1[%c0_6, %c18, %c0_7] : memref<1x328x8xbf16, #tpu.memory_space<vmem>>, vector<1x288x8xbf16>
    %7 = vector.shape_cast %6 : vector<1x288x8xbf16> to vector<288x8xbf16>
    %c0_8 = arith.constant 0 : index
    %c19 = arith.constant 19 : index
    %c0_9 = arith.constant 0 : index
    %8 = vector.load %arg1[%c0_8, %c19, %c0_9] : memref<1x328x8xbf16, #tpu.memory_space<vmem>>, vector<1x288x8xbf16>
    %9 = vector.shape_cast %8 : vector<1x288x8xbf16> to vector<288x8xbf16>
    %c0_10 = arith.constant 0 : index
    %c20 = arith.constant 20 : index
    %c0_11 = arith.constant 0 : index
    %10 = vector.load %arg1[%c0_10, %c20, %c0_11] : memref<1x328x8xbf16, #tpu.memory_space<vmem>>, vector<1x288x8xbf16>
    %11 = vector.shape_cast %10 : vector<1x288x8xbf16> to vector<288x8xbf16>
    %c0_12 = arith.constant 0 : index
    %c36 = arith.constant 36 : index
    %c0_13 = arith.constant 0 : index
    %12 = vector.load %arg1[%c0_12, %c36, %c0_13] : memref<1x328x8xbf16, #tpu.memory_space<vmem>>, vector<1x288x8xbf16>
    %13 = vector.shape_cast %12 : vector<1x288x8xbf16> to vector<288x8xbf16>
    %c0_14 = arith.constant 0 : index
    %c37 = arith.constant 37 : index
    %c0_15 = arith.constant 0 : index
    %14 = vector.load %arg1[%c0_14, %c37, %c0_15] : memref<1x328x8xbf16, #tpu.memory_space<vmem>>, vector<1x288x8xbf16>
    %15 = vector.shape_cast %14 : vector<1x288x8xbf16> to vector<288x8xbf16>
    %c0_16 = arith.constant 0 : index
    %c38 = arith.constant 38 : index
    %c0_17 = arith.constant 0 : index
    %16 = vector.load %arg1[%c0_16, %c38, %c0_17] : memref<1x328x8xbf16, #tpu.memory_space<vmem>>, vector<1x288x8xbf16>
    %17 = vector.shape_cast %16 : vector<1x288x8xbf16> to vector<288x8xbf16>
    %cst = arith.constant 0.000000e+00 : bf16
    %18 = vector.broadcast %cst : bf16 to vector<288x56xbf16>
    %19 = tpu.concatenate %1, %3, %5, %7, %9, %11, %13, %15, %17, %18 in 1 : vector<288x8xbf16>, vector<288x8xbf16>, vector<288x8xbf16>, vector<288x8xbf16>, vector<288x8xbf16>, vector<288x8xbf16>, vector<288x8xbf16>, vector<288x8xbf16>, vector<288x8xbf16>, vector<288x56xbf16> -> vector<288x128xbf16>
    %c0_18 = arith.constant 0 : index
    %c0_19 = arith.constant 0 : index
    %20 = vector.load %arg2[%c0_18, %c0_19] : memref<128x128xbf16, #tpu.memory_space<vmem>>, vector<128x128xbf16>
    %cst_20 = arith.constant dense<0.000000e+00> : vector<288x128xf32>
    %21 = tpu.matmul %19, %20, %cst_20 {dimension_numbers = #tpu.dot_dimension_numbers<[1], [0], [0], [1], [0, 0, 1, 1], [], []>} : vector<288x128xbf16>, vector<128x128xbf16>, vector<288x128xf32> -> vector<288x128xf32>
    %c0_21 = arith.constant 0 : index
    %c0_22 = arith.constant 0 : index
    %22 = vector.load %arg3[%c0_21, %c0_22] : memref<1x128xf32, #tpu.memory_space<vmem>>, vector<1x128xf32>
    %23 = vector.broadcast %22 : vector<1x128xf32> to vector<288x128xf32>
    %24 = arith.addf %21, %23 : vector<288x128xf32>
    %cst_23 = arith.constant 0.000000e+00 : f32
    %25 = vector.broadcast %cst_23 : f32 to vector<288x128xf32>
    %26 = arith.maximumf %24, %25 : vector<288x128xf32>
    %27 = vector.shape_cast %26 : vector<288x128xf32> to vector<1x288x128xf32>
    %c0_24 = arith.constant 0 : index
    %c0_25 = arith.constant 0 : index
    %28 = vector.load %arg4[%c0_24, %c0_25] : memref<288x1xf32, #tpu.memory_space<vmem>>, vector<288x1xf32>
    %29 = vector.shape_cast %28 : vector<288x1xf32> to vector<1x288x1xf32>
    %30 = vector.broadcast %29 : vector<1x288x1xf32> to vector<1x288x128xf32>
    %31 = arith.mulf %27, %30 : vector<1x288x128xf32>
    %cst_26 = arith.constant dense<0.000000e+00> : vector<1x128xf32>
    %32 = vector.multi_reduction <add>, %31, %cst_26 [1] : vector<1x288x128xf32> to vector<1x128xf32>
    %c0_27 = arith.constant 0 : index
    %c0_28 = arith.constant 0 : index
    %c0_29 = arith.constant 0 : index
    %33 = vector.load %arg5[%c0_27, %c0_28, %c0_29] : memref<1x1x128xf32, #tpu.memory_space<vmem>>, vector<1x1x128xf32>
    %34 = vector.shape_cast %33 : vector<1x1x128xf32> to vector<1x128xf32>
    %35 = vector.shape_cast %32 : vector<1x128xf32> to vector<1x1x128xf32>
    tpu.vector_store %arg5[%c0_27, %c0_28, %c0_29], %35 {strides = array<i32>} : memref<1x1x128xf32, #tpu.memory_space<vmem>>, vector<1x1x128xf32>,
    return
  }
  func.func @transform_0(%arg0: i32) -> (i32, i32, i32) {
    %c0_i32 = arith.constant 0 : i32
    %c0_i32_0 = arith.constant 0 : i32
    %c0_i32_1 = arith.constant 0 : i32
    return %arg0, %c0_i32, %c0_i32_0 : i32, i32, i32
  }
  func.func @transform_1(%arg0: i32) -> (i32, i32) {
    %c0_i32 = arith.constant 0 : i32
    %c0_i32_0 = arith.constant 0 : i32
    %c0_i32_1 = arith.constant 0 : i32
    return %c0_i32, %c0_i32_0 : i32, i32
  }
  func.func @transform_2(%arg0: i32) -> (i32, i32) {
    %c0_i32 = arith.constant 0 : i32
    %c0_i32_0 = arith.constant 0 : i32
    %c0_i32_1 = arith.constant 0 : i32
    return %c0_i32, %c0_i32_0 : i32, i32
  }
  func.func @transform_3(%arg0: i32) -> (i32, i32) {
    %c0_i32 = arith.constant 0 : i32
    %c0_i32_0 = arith.constant 0 : i32
    %c0_i32_1 = arith.constant 0 : i32
    return %c0_i32, %c0_i32_0 : i32, i32
  }
  func.func @transform_4(%arg0: i32) -> (i32, i32, i32) {
    %c0_i32 = arith.constant 0 : i32
    %c0_i32_0 = arith.constant 0 : i32
    %c0_i32_1 = arith.constant 0 : i32
    return %arg0, %c0_i32, %c0_i32_0 : i32, i32, i32
  }
}

module attributes {stable_mosaic.version = 11 : i64} {
  func.func @vqa_head_kernel(%arg0: memref<2x128xf32, #tpu.memory_space<vmem>>, %arg1: memref<2x8x128xf32, #tpu.memory_space<vmem>>, %arg2: memref<256x256xf32, #tpu.memory_space<vmem>>, %arg3: memref<1x256xf32, #tpu.memory_space<vmem>>, %arg4: memref<128x128xf32, #tpu.memory_space<vmem>>, %arg5: memref<1x128xf32, #tpu.memory_space<vmem>>, %arg6: memref<2x128xf32, #tpu.memory_space<vmem>>) attributes {dimension_semantics = [], scalar_prefetch = 0 : i64, scratch_operands = 0 : i64, tpu.core_type = #tpu.core_type<tc>} {
    %c0 = arith.constant 0 : index
    %c0_0 = arith.constant 0 : index
    %c0_1 = arith.constant 0 : index
    %0 = vector.load %arg1[%c0, %c0_0, %c0_1] : memref<2x8x128xf32, #tpu.memory_space<vmem>>, vector<2x8x128xf32>
    %cst = arith.constant dense<0.000000e+00> : vector<2x128xf32>
    %1 = vector.multi_reduction <add>, %0, %cst [1] : vector<2x8x128xf32> to vector<2x128xf32>
    %cst_2 = arith.constant 8.000000e+00 : f32
    %2 = vector.broadcast %cst_2 : f32 to vector<2x128xf32>
    %3 = arith.divf %1, %2 : vector<2x128xf32>
    %c0_3 = arith.constant 0 : index
    %c0_4 = arith.constant 0 : index
    %4 = vector.load %arg0[%c0_3, %c0_4] : memref<2x128xf32, #tpu.memory_space<vmem>>, vector<2x128xf32>
    %5 = tpu.concatenate %4, %3 in 1 : vector<2x128xf32>, vector<2x128xf32> -> vector<2x256xf32>
    %c0_5 = arith.constant 0 : index
    %c0_6 = arith.constant 0 : index
    %6 = vector.load %arg2[%c0_5, %c0_6] : memref<256x256xf32, #tpu.memory_space<vmem>>, vector<256x256xf32>
    %cst_7 = arith.constant dense<0.000000e+00> : vector<2x256xf32>
    %7 = tpu.matmul %5, %6, %cst_7 {dimension_numbers = #tpu.dot_dimension_numbers<[1], [0], [0], [1], [0, 0, 1, 1], [], []>} : vector<2x256xf32>, vector<256x256xf32>, vector<2x256xf32> -> vector<2x256xf32>
    %c0_8 = arith.constant 0 : index
    %c0_9 = arith.constant 0 : index
    %8 = vector.load %arg3[%c0_8, %c0_9] : memref<1x256xf32, #tpu.memory_space<vmem>>, vector<1x256xf32>
    %9 = vector.broadcast %8 : vector<1x256xf32> to vector<2x256xf32>
    %10 = arith.addf %7, %9 : vector<2x256xf32>
    %11 = math.tanh %10 : vector<2x256xf32>
    %12 = vector.extract_strided_slice %11 {offsets = [0, 0], sizes = [2, 128], strides = [1, 1]} : vector<2x256xf32> to vector<2x128xf32>
    %13 = vector.extract_strided_slice %11 {offsets = [0, 128], sizes = [2, 128], strides = [1, 1]} : vector<2x256xf32> to vector<2x128xf32>
    %14 = arith.mulf %12, %13 : vector<2x128xf32>
    %c0_10 = arith.constant 0 : index
    %c0_11 = arith.constant 0 : index
    %15 = vector.load %arg4[%c0_10, %c0_11] : memref<128x128xf32, #tpu.memory_space<vmem>>, vector<128x128xf32>
    %cst_12 = arith.constant dense<0.000000e+00> : vector<2x128xf32>
    %16 = tpu.matmul %14, %15, %cst_12 {dimension_numbers = #tpu.dot_dimension_numbers<[1], [0], [0], [1], [0, 0, 1, 1], [], []>} : vector<2x128xf32>, vector<128x128xf32>, vector<2x128xf32> -> vector<2x128xf32>
    %c0_13 = arith.constant 0 : index
    %c0_14 = arith.constant 0 : index
    %17 = vector.load %arg5[%c0_13, %c0_14] : memref<1x128xf32, #tpu.memory_space<vmem>>, vector<1x128xf32>
    %18 = vector.broadcast %17 : vector<1x128xf32> to vector<2x128xf32>
    %19 = arith.addf %16, %18 : vector<2x128xf32>
    %c0_15 = arith.constant 0 : index
    %c0_16 = arith.constant 0 : index
    %20 = vector.load %arg6[%c0_15, %c0_16] : memref<2x128xf32, #tpu.memory_space<vmem>>, vector<2x128xf32>
    tpu.vector_store %arg6[%c0_15, %c0_16], %19 {strides = array<i32>} : memref<2x128xf32, #tpu.memory_space<vmem>>, vector<2x128xf32>,
    return
  }
}

</mosaic_0001>

<llo_original>
// kernel: vqa_conv_abstract_forward.3
$region0: #{vqa_conv_abstract_forward.3}
  #allocation0 [shape = 'u32[]', space=smem, size = 0x4, offset = 0x4, fixed_abs, tag = 'smem constant byte address 0x4 - core index']
  #allocation1 [shape = 'u32[144,128]{1,0:T(1,128)}', space=vmem, size = 0x12000, scoped, tag = 'internal scratch']
  %s0 = inlined_call_operand.vmem [shape: f32[2,128], index: 0, kind: input, shape index: {}]
  %s1 = inlined_call_operand.vmem [shape: f32[2,8,128], index: 1, kind: input, shape index: {}]
  %s2 = inlined_call_operand.vmem [shape: f32[256,256], index: 2, kind: input, shape index: {}]
  %s3 = inlined_call_operand.vmem [shape: f32[1,256], index: 3, kind: input, shape index: {}]
  %s4 = inlined_call_operand.vmem [shape: f32[128,128], index: 4, kind: input, shape index: {}]
  %s5 = inlined_call_operand.vmem [shape: f32[1,128], index: 5, kind: input, shape index: {}]
  %s6 = inlined_call_operand.hbm [shape: f32[2,128], index: 6, kind: output, shape index: {}]
  %s7 = sld [smem:[#allocation0]]
  $region34: #{vqa_conv_abstract_forward.3} parent=0
    _
  %s9 = ssub.s32 1, %s7
  %s10 = scalar_select 0, %s9, %s7
  $region1: #{vqa_conv_abstract_forward.3} parent=0
    #allocation2 [shape = 'u8[1024]{0}', space=vmem, size = 0x400, scoped, tag = 'output window, operand 0, single buffered']
    #allocation3 [shape = 's32[1]{0}', space=sflag, size = 0x4, scoped, tag = 'scoped memory for vqa_conv_abstract_forward.3']
    %11 = vsyncpa [#allocation3], 0
    // Predicated region
    $region2: #{vqa_conv_abstract_forward.3} parent=1 // pred_check
      _
    $region3: #{vqa_conv_abstract_forward.3} parent=1 // pred_check_branch
      %13 = sbr.rel (0) target = $region5
    $region4: #{vqa_conv_abstract_forward.3} parent=1 // pred_region
      _
    $region5: #{vqa_conv_abstract_forward.3} parent=1 // pred_fallthru
      _
    // Predicated region
    $region6: #{vqa_conv_abstract_forward.3} parent=1 // pred_check
      _
    $region7: #{vqa_conv_abstract_forward.3} parent=1 // pred_check_branch
      %15 = sbr.rel (0) target = $region9
    $region8: #{vqa_conv_abstract_forward.3} parent=1 // pred_region
      _
    $region9: #{vqa_conv_abstract_forward.3} parent=1 // pred_fallthru
      _
    // Predicated region
    $region10: #{vqa_conv_abstract_forward.3} parent=1 // pred_check
      _
    $region11: #{vqa_conv_abstract_forward.3} parent=1 // pred_check_branch
      %17 = sbr.rel (0) target = $region13
    $region12: #{vqa_conv_abstract_forward.3} parent=1 // pred_region
      _
    $region13: #{vqa_conv_abstract_forward.3} parent=1 // pred_fallthru
      _
    // Predicated region
    $region14: #{vqa_conv_abstract_forward.3} parent=1 // pred_check
      _
    $region15: #{vqa_conv_abstract_forward.3} parent=1 // pred_check_branch
      %19 = sbr.rel (0) target = $region17
    $region16: #{vqa_conv_abstract_forward.3} parent=1 // pred_region
      _
    $region17: #{vqa_conv_abstract_forward.3} parent=1 // pred_fallthru
      _
    // Predicated region
    $region18: #{vqa_conv_abstract_forward.3} parent=1 // pred_check
      _
    $region19: #{vqa_conv_abstract_forward.3} parent=1 // pred_check_branch
      %21 = sbr.rel (0) target = $region21
    $region20: #{vqa_conv_abstract_forward.3} parent=1 // pred_region
      _
    $region21: #{vqa_conv_abstract_forward.3} parent=1 // pred_fallthru
      _
    // Predicated region
    $region22: #{vqa_conv_abstract_forward.3} parent=1 // pred_check
      _
    $region23: #{vqa_conv_abstract_forward.3} parent=1 // pred_check_branch
      %23 = sbr.rel (0) target = $region25
    $region24: #{vqa_conv_abstract_forward.3} parent=1 // pred_region
      _
    $region25: #{vqa_conv_abstract_forward.3} parent=1 // pred_fallthru
      _
    %v24 = vld [vmem:[%s1] sm:$0xff]
    %v25 = vld [vmem:[%s1 + $0x8] sm:$0xff]
    %v26 = vrot.slane %v24, 4
    %v27 = vadd.f32 %v24, %v26
    %v28 = vrot.slane %v27, 2
    %v29 = vadd.f32 %v27, %v28
    %v30 = vrot.slane %v29, 1
    %v31 = vadd.f32 %v29, %v30
    %v32 = vrot.slane %v25, 4
    %v33 = vadd.f32 %v25, %v32
    %v34 = vrot.slane %v33, 2
    %v35 = vadd.f32 %v33, %v34
    %v36 = vrot.slane %v35, 1
    %v37 = vadd.f32 %v35, %v36
    %v38 = vrcp.pop 8.0
    %v39 = vmul.f32 %v31, %v38
    %v40 = vmul.f32 %v37, %v38
    %v41 = vld [vmem:[%s0] sm:$0x3]
    %vm44 = vcmask 1041409
    %v45 = vsel %vm44, %v40, %v39
    %v47 = vld [vmem:[%s2] sm:$0xff]
    %v48 = vld [vmem:[%s2 + $0x8] sm:$0xff]
    %v49 = vld [vmem:[%s2 + $0x10] sm:$0xff]
    %v50 = vld [vmem:[%s2 + $0x18] sm:$0xff]
    %v51 = vld [vmem:[%s2 + $0x20] sm:$0xff]
    %v52 = vld [vmem:[%s2 + $0x28] sm:$0xff]
    %v53 = vld [vmem:[%s2 + $0x30] sm:$0xff]
    %v54 = vld [vmem:[%s2 + $0x38] sm:$0xff]
    %v55 = vld [vmem:[%s2 + $0x40] sm:$0xff]
    %v56 = vld [vmem:[%s2 + $0x48] sm:$0xff]
    %v57 = vld [vmem:[%s2 + $0x50] sm:$0xff]
    %v58 = vld [vmem:[%s2 + $0x58] sm:$0xff]
    %v59 = vld [vmem:[%s2 + $0x60] sm:$0xff]
    %v60 = vld [vmem:[%s2 + $0x68] sm:$0xff]
    %v61 = vld [vmem:[%s2 + $0x70] sm:$0xff]
    %v62 = vld [vmem:[%s2 + $0x78] sm:$0xff]
    %v63 = vld [vmem:[%s2 + $0x80] sm:$0xff]
    %v64 = vld [vmem:[%s2 + $0x88] sm:$0xff]
    %v65 = vld [vmem:[%s2 + $0x90] sm:$0xff]
    %v66 = vld [vmem:[%s2 + $0x98] sm:$0xff]
    %v67 = vld [vmem:[%s2 + $0xa0] sm:$0xff]
    %v68 = vld [vmem:[%s2 + $0xa8] sm:$0xff]
    %v69 = vld [vmem:[%s2 + $0xb0] sm:$0xff]
    %v70 = vld [vmem:[%s2 + $0xb8] sm:$0xff]
    %v71 = vld [vmem:[%s2 + $0xc0] sm:$0xff]
    %v72 = vld [vmem:[%s2 + $0xc8] sm:$0xff]
    %v73 = vld [vmem:[%s2 + $0xd0] sm:$0xff]
    %v74 = vld [vmem:[%s2 + $0xd8] sm:$0xff]
    %v75 = vld [vmem:[%s2 + $0xe0] sm:$0xff]
    %v76 = vld [vmem:[%s2 + $0xe8] sm:$0xff]
    %v77 = vld [vmem:[%s2 + $0xf0] sm:$0xff]
    %v78 = vld [vmem:[%s2 + $0xf8] sm:$0xff]
    %v79 = vld [vmem:[%s2 + $0x100] sm:$0xff]
    %v80 = vld [vmem:[%s2 + $0x108] sm:$0xff]
    %v81 = vld [vmem:[%s2 + $0x110] sm:$0xff]
    %v82 = vld [vmem:[%s2 + $0x118] sm:$0xff]
    %v83 = vld [vmem:[%s2 + $0x120] sm:$0xff]
    %v84 = vld [vmem:[%s2 + $0x128] sm:$0xff]
    %v85 = vld [vmem:[%s2 + $0x130] sm:$0xff]
    %v86 = vld [vmem:[%s2 + $0x138] sm:$0xff]
    %v87 = vld [vmem:[%s2 + $0x140] sm:$0xff]
    %v88 = vld [vmem:[%s2 + $0x148] sm:$0xff]
    %v89 = vld [vmem:[%s2 + $0x150] sm:$0xff]
    %v90 = vld [vmem:[%s2 + $0x158] sm:$0xff]
    %v91 = vld [vmem:[%s2 + $0x160] sm:$0xff]
    %v92 = vld [vmem:[%s2 + $0x168] sm:$0xff]
    %v93 = vld [vmem:[%s2 + $0x170] sm:$0xff]
    %v94 = vld [vmem:[%s2 + $0x178] sm:$0xff]
    %v95 = vld [vmem:[%s2 + $0x180] sm:$0xff]
    %v96 = vld [vmem:[%s2 + $0x188] sm:$0xff]
    %v97 = vld [vmem:[%s2 + $0x190] sm:$0xff]
    %v98 = vld [vmem:[%s2 + $0x198] sm:$0xff]
    %v99 = vld [vmem:[%s2 + $0x1a0] sm:$0xff]
    %v100 = vld [vmem:[%s2 + $0x1a8] sm:$0xff]
    %v101 = vld [vmem:[%s2 + $0x1b0] sm:$0xff]
    %v102 = vld [vmem:[%s2 + $0x1b8] sm:$0xff]
    %v103 = vld [vmem:[%s2 + $0x1c0] sm:$0xff]
    %v104 = vld [vmem:[%s2 + $0x1c8] sm:$0xff]
    %v105 = vld [vmem:[%s2 + $0x1d0] sm:$0xff]
    %v106 = vld [vmem:[%s2 + $0x1d8] sm:$0xff]
    %v107 = vld [vmem:[%s2 + $0x1e0] sm:$0xff]
    %v108 = vld [vmem:[%s2 + $0x1e8] sm:$0xff]
    %v109 = vld [vmem:[%s2 + $0x1f0] sm:$0xff]
    %v110 = vld [vmem:[%s2 + $0x1f8] sm:$0xff]
    %v111 = vld [vmem:[%s3] sm:$0x3]
    %v113 = vlaneseq
    %v114 = vshrl.u32 %v113, 7
    %v115 = vsub.s32 0, %v114
    %v116 = vrot.slane %v111, %v115
    %v117 = vlaneseq
    %v118 = vshrl.u32 %v117, 7
    %v119 = vsub.s32 1, %v118
    %v120 = vrot.slane %v111, %v119
    %123 = vmatprep.subr.mxu0 %v78
    %124 = vmatpush1.msra.mxu0 %v77
    %125 = vmatprep.subr.mxu0 %v76
    %126 = vmatpush1.msra.mxu0 %v75
    %127 = vmatprep.subr.mxu0 %v74
    %128 = vmatpush1.msra.mxu0 %v73
    %129 = vmatprep.subr.mxu0 %v72
    %130 = vmatpush1.msra.mxu0 %v71
    %131 = vmatprep.subr.mxu0 %v70
    %132 = vmatpush1.msra.mxu0 %v69
    %133 = vmatprep.subr.mxu0 %v68
    %134 = vmatpush1.msra.mxu0 %v67
    %135 = vmatprep.subr.mxu0 %v66
    %136 = vmatpush1.msra.mxu0 %v65
    %137 = vmatprep.subr.mxu0 %v64
    %138 = vmatpush1.msra.mxu0 %v63
    %139 = vmatprep.subr.mxu0 %v62
    %140 = vmatpush1.msra.mxu0 %v61
    %141 = vmatprep.subr.mxu0 %v60
    %142 = vmatpush1.msra.mxu0 %v59
    %143 = vmatprep.subr.mxu0 %v58
    %144 = vmatpush1.msra.mxu0 %v57
    %145 = vmatprep.subr.mxu0 %v56
    %146 = vmatpush1.msra.mxu0 %v55
    %147 = vmatprep.subr.mxu0 %v54
    %148 = vmatpush1.msra.mxu0 %v53
    %149 = vmatprep.subr.mxu0 %v52
    %150 = vmatpush1.msra.mxu0 %v51
    %151 = vmatprep.subr.mxu0 %v50
    %152 = vmatpush1.msra.mxu0 %v49
    %153 = vmatprep.subr.mxu0 %v48
    %154 = vmatpush1.msra.mxu0 %v47
    %155 = vmatprep.subr.mxu0 %v110
    %156 = vmatpush2.msra.mxu0 %v109
    %157 = vmatprep.subr.mxu0 %v108
    %158 = vmatpush2.msra.mxu0 %v107
    %159 = vmatprep.subr.mxu0 %v106
    %160 = vmatpush2.msra.mxu0 %v105
    %161 = vmatprep.subr.mxu0 %v104
    %162 = vmatpush2.msra.mxu0 %v103
    %163 = vmatprep.subr.mxu0 %v102
    %164 = vmatpush2.msra.mxu0 %v101
    %165 = vmatprep.subr.mxu0 %v100
    %166 = vmatpush2.msra.mxu0 %v99
    %167 = vmatprep.subr.mxu0 %v98
    %168 = vmatpush2.msra.mxu0 %v97
    %169 = vmatprep.subr.mxu0 %v96
    %170 = vmatpush2.msra.mxu0 %v95
    %171 = vmatprep.subr.mxu0 %v94
    %172 = vmatpush2.msra.mxu0 %v93
    %173 = vmatprep.subr.mxu0 %v92
    %174 = vmatpush2.msra.mxu0 %v91
    %175 = vmatprep.subr.mxu0 %v90
    %176 = vmatpush2.msra.mxu0 %v89
    %177 = vmatprep.subr.mxu0 %v88
    %178 = vmatpush2.msra.mxu0 %v87
    %179 = vmatprep.subr.mxu0 %v86
    %180 = vmatpush2.msra.mxu0 %v85
    %181 = vmatprep.subr.mxu0 %v84
    %182 = vmatpush2.msra.mxu0 %v83
    %183 = vmatprep.subr.mxu0 %v82
    %184 = vmatpush2.msra.mxu0 %v81
    %185 = vmatprep.subr.mxu0 %v80
    %186 = vmatpush2.msra.mxu0 %v79
    %187 = vmatprep.mubr.f32.mxu0 %v45
    %188 = vmatmul.mubr.f32.gmra.mxu0 %v41
    %v189 = vpop.f32.mrf.mxu0
    %v190 = vadd.f32 %v116, %v189
    %v191 = vpop.f32.mrf.mxu0
    %v192 = vadd.f32 %v120, %v191
    %193 = vdwg.mxu0
    %v194 = vtanh.pop %v190
    %v195 = vtanh.pop %v192
    %v196 = vmul.f32 %v194, %v195
    %v197 = vld [vmem:[%s4] sm:$0xff]
    %v198 = vld [vmem:[%s4 + $0x8] sm:$0xff]
    %v199 = vld [vmem:[%s4 + $0x10] sm:$0xff]
    %v200 = vld [vmem:[%s4 + $0x18] sm:$0xff]
    %v201 = vld [vmem:[%s4 + $0x20] sm:$0xff]
    %v202 = vld [vmem:[%s4 + $0x28] sm:$0xff]
    %v203 = vld [vmem:[%s4 + $0x30] sm:$0xff]
    %v204 = vld [vmem:[%s4 + $0x38] sm:$0xff]
    %v205 = vld [vmem:[%s4 + $0x40] sm:$0xff]
    %v206 = vld [vmem:[%s4 + $0x48] sm:$0xff]
    %v207 = vld [vmem:[%s4 + $0x50] sm:$0xff]
    %v208 = vld [vmem:[%s4 + $0x58] sm:$0xff]
    %v209 = vld [vmem:[%s4 + $0x60] sm:$0xff]
    %v210 = vld [vmem:[%s4 + $0x68] sm:$0xff]
    %v211 = vld [vmem:[%s4 + $0x70] sm:$0xff]
    %v212 = vld [vmem:[%s4 + $0x78] sm:$0xff]
    %v213 = vld [vmem:[%s5] sm:$0x1]
    %v215 = vlaneseq
    %v216 = vshrl.u32 %v215, 7
    %v217 = vsub.s32 0, %v216
    %v218 = vrot.slane %v213, %v217
    %220 = vmatprep.subr.mxu0 0.0
    %221 = vmatpush1.msra.mxu0 %v212
    %222 = vmatprep.subr.mxu0 0.0
    %223 = vmatpush1.msra.mxu0 %v211
    %224 = vmatprep.subr.mxu0 0.0
    %225 = vmatpush1.msra.mxu0 %v210
    %226 = vmatprep.subr.mxu0 0.0
    %227 = vmatpush1.msra.mxu0 %v209
    %228 = vmatprep.subr.mxu0 0.0
    %229 = vmatpush1.msra.mxu0 %v208
    %230 = vmatprep.subr.mxu0 0.0
    %231 = vmatpush1.msra.mxu0 %v207
    %232 = vmatprep.subr.mxu0 0.0
    %233 = vmatpush1.msra.mxu0 %v206
    %234 = vmatprep.subr.mxu0 0.0
    %235 = vmatpush1.msra.mxu0 %v205
    %236 = vmatprep.subr.mxu0 0.0
    %237 = vmatpush1.msra.mxu0 %v204
    %238 = vmatprep.subr.mxu0 0.0
    %239 = vmatpush1.msra.mxu0 %v203
    %240 = vmatprep.subr.mxu0 0.0
    %241 = vmatpush1.msra.mxu0 %v202
    %242 = vmatprep.subr.mxu0 0.0
    %243 = vmatpush1.msra.mxu0 %v201
    %244 = vmatprep.subr.mxu0 0.0
    %245 = vmatpush1.msra.mxu0 %v200
    %246 = vmatprep.subr.mxu0 0.0
    %247 = vmatpush1.msra.mxu0 %v199
    %248 = vmatprep.subr.mxu0 0.0
    %249 = vmatpush1.msra.mxu0 %v198
    %250 = vmatprep.subr.mxu0 0.0
    %251 = vmatpush1.msra.mxu0 %v197
    %252 = vmatprep.subr.mxu0 0.0
    %253 = vmatpush2.msra.mxu0 0.0
    %254 = vmatprep.subr.mxu0 0.0
    %255 = vmatpush2.msra.mxu0 0.0
    %256 = vmatprep.subr.mxu0 0.0
    %257 = vmatpush2.msra.mxu0 0.0
    %258 = vmatprep.subr.mxu0 0.0
    %259 = vmatpush2.msra.mxu0 0.0
    %260 = vmatprep.subr.mxu0 0.0
    %261 = vmatpush2.msra.mxu0 0.0
    %262 = vmatprep.subr.mxu0 0.0
    %263 = vmatpush2.msra.mxu0 0.0
    %264 = vmatprep.subr.mxu0 0.0
    %265 = vmatpush2.msra.mxu0 0.0
    %266 = vmatprep.subr.mxu0 0.0
    %267 = vmatpush2.msra.mxu0 0.0
    %268 = vmatprep.subr.mxu0 0.0
    %269 = vmatpush2.msra.mxu0 0.0
    %270 = vmatprep.subr.mxu0 0.0
    %271 = vmatpush2.msra.mxu0 0.0
    %272 = vmatprep.subr.mxu0 0.0
    %273 = vmatpush2.msra.mxu0 0.0
    %274 = vmatprep.subr.mxu0 0.0
    %275 = vmatpush2.msra.mxu0 0.0
    %276 = vmatprep.subr.mxu0 0.0
    %277 = vmatpush2.msra.mxu0 0.0
    %278 = vmatprep.subr.mxu0 0.0
    %279 = vmatpush2.msra.mxu0 0.0
    %280 = vmatprep.subr.mxu0 0.0
    %281 = vmatpush2.msra.mxu0 0.0
    %282 = vmatprep.subr.mxu0 0.0
    %283 = vmatpush2.msra.mxu0 0.0
    %284 = vmatprep.mubr.f32.mxu0 0.0
    %285 = vmatmul.mubr.f32.gmra.mxu0 %v196
    %v286 = vpop.f32.mrf.mxu0
    %v287 = vadd.f32 %v218, %v286
    %v288 = vpop.f32.mrf.mxu0
    %289 = vdwg.mxu0
    %290 = vst [vmem:[#allocation2] sm:$0x3] %v287
    // Predicated region
    $region26: #{vqa_conv_abstract_forward.3} parent=1 // pred_check
      _
    $region27: #{vqa_conv_abstract_forward.3} parent=1 // pred_check_branch
      %292 = sbr.rel (0) target = $region29
    $region28: #{vqa_conv_abstract_forward.3} parent=1 // pred_region
      %s294 = ssub.s32 32, 32
      %295 = vsyncadd [#allocation3], %s294
      %s297 = sshll.u32 [#allocation2], 4
      %s298 = int_to_ptr.vmem [resolvable:$true] %s297
      %300 = dma.vmem_to_hbm [thread:$0]  %s298, 32, %s6, [#allocation3]
    $region29: #{vqa_conv_abstract_forward.3} parent=1 // pred_fallthru
      _
    // Predicated region
    $region30: #{vqa_conv_abstract_forward.3} parent=1 // pred_check
      _
    $region31: #{vqa_conv_abstract_forward.3} parent=1 // pred_check_branch
      %302 = sbr.rel (0) target = $region33
    $region32: #{vqa_conv_abstract_forward.3} parent=1 // pred_region
      %303 = dma.done [#allocation3], 32
    $region33: #{vqa_conv_abstract_forward.3} parent=1 // pred_fallthru
      _
    %304 = vsyncpa [#allocation3], 1

// kernel: vqa_conv_abstract_forward.2
$region0: #{vqa_conv_abstract_forward.2}
  #allocation0 [shape = 'u32[]', space=smem, size = 0x4, offset = 0x4, fixed_abs, tag = 'smem constant byte address 0x4 - core index']
  #allocation1 [shape = 'u32[144,128]{1,0:T(1,128)}', space=vmem, size = 0x12000, scoped, tag = 'internal scratch']
  %s0 = inlined_call_operand.vmem [shape: bf16[2,328,8], index: 0, kind: input, shape index: {}]
  %s1 = inlined_call_operand.vmem [shape: bf16[128,128], index: 1, kind: input, shape index: {}]
  %s2 = inlined_call_operand.vmem [shape: f32[1,128], index: 2, kind: input, shape index: {}]
  %s3 = inlined_call_operand.vmem [shape: f32[288,1], index: 3, kind: input, shape index: {}]
  %s4 = inlined_call_operand.vmem [shape: f32[2,1,128], index: 4, kind: output, shape index: {}]
  %s5 = sld [smem:[#allocation0]]
  $region49: #{vqa_conv_abstract_forward.2} parent=0
    _
  %s7 = ssub.s32 1, %s5
  %s8 = scalar_select 0, %s7, %s5
  loop: start=0, step=1, limit=4
  $region2: #{vqa_conv_abstract_forward.2} parent=0 // loop_pre_header
    _
  $region3: #{vqa_conv_abstract_forward.2} parent=0 // loop_header
    %s10 = sphi 0, %s14
    %p11 = scmp.ge.s32.totalorder %s10, 4
    %s20 = sphi 0, %s22
    %s23 = sphi 0, %s20
    %s24 = sphi 0, %s23
    %s40 = sphi 0, %s24
    %s44 = sphi 0, %s44
    %s46 = sphi 0, %s44
    %s47 = sphi 0, %s46
    %s61 = sphi 0, %s47
    %s65 = sphi 0, %s65
    %s67 = sphi 0, %s65
    %s68 = sphi 0, %s67
    %s82 = sphi 0, %s68
    %s86 = sphi 0, %s86
    %s88 = sphi 0, %s86
    %s89 = sphi 0, %s88
    %s103 = sphi 0, %s89
    %s109 = sphi 0, %s111
    %s112 = sphi 0, %s109
    %s113 = sphi 0, %s112
    %s129 = sphi 0, %s113
  $region4: #{vqa_conv_abstract_forward.2} parent=0 // loop_header_branch
    %13 = sbr.rel (%p11) target = $region8
  $region5: #{vqa_conv_abstract_forward.2} parent=0 // loop_body
    %s15 = ssub.s32 %s10, 1
    %s16 = ssub.s32 %s10, 2
    %s17 = sadd.s32 %s10, 1
    %s18 = ssub.s32 %s10, %s17
    %p19 = scmp.eq.s32.totalorder %s18, 0
    %s21 = sadd.s32 %s20, 1
    %s22 = scalar_select %p19, %s20, %s21
    %p25 = pneg %p19
    %p26 = scmp.eq.s32.totalorder %s10, 1
    %p27 = por %p25, %p26
    %p28 = scmp.ne.s32.totalorder %s20, %s23
    %p29 = scmp.eq.s32.totalorder %s10, 0
    %p30 = por %p28, %p29
    %p31 = scmp.ne.s32.totalorder %s20, %s23
    %p32 = scmp.eq.s32.totalorder %s15, 1
    %p33 = por %p31, %p32
    %p34 = scmp.ne.s32.totalorder %s23, %s24
    %p35 = scmp.eq.s32.totalorder %s15, 0
    %p36 = por %p34, %p35
    %p37 = scmp.ne.s32.totalorder %s23, %s24
    %p38 = scmp.eq.s32.totalorder %s16, 1
    %p39 = por %p37, %p38
    %p41 = scmp.ne.s32.totalorder %s24, %s40
    %p42 = scmp.eq.s32.totalorder %s16, 0
    %p43 = por %p41, %p42
    %s45 = sadd.s32 %s44, 1
    %p48 = scmp.eq.s32.totalorder %s10, 1
    %p49 = scmp.ne.s32.totalorder %s44, %s46
    %p50 = scmp.eq.s32.totalorder %s10, 0
    %p51 = por %p49, %p50
    %p52 = scmp.ne.s32.totalorder %s44, %s46
    %p53 = scmp.eq.s32.totalorder %s15, 1
    %p54 = por %p52, %p53
    %p55 = scmp.ne.s32.totalorder %s46, %s47
    %p56 = scmp.eq.s32.totalorder %s15, 0
    %p57 = por %p55, %p56
    %p58 = scmp.ne.s32.totalorder %s46, %s47
    %p59 = scmp.eq.s32.totalorder %s16, 1
    %p60 = por %p58, %p59
    %p62 = scmp.ne.s32.totalorder %s47, %s61
    %p63 = scmp.eq.s32.totalorder %s16, 0
    %p64 = por %p62, %p63
    %s66 = sadd.s32 %s65, 1
    %p69 = scmp.eq.s32.totalorder %s10, 1
    %p70 = scmp.ne.s32.totalorder %s65, %s67
    %p71 = scmp.eq.s32.totalorder %s10, 0
    %p72 = por %p70, %p71
    %p73 = scmp.ne.s32.totalorder %s65, %s67
    %p74 = scmp.eq.s32.totalorder %s15, 1
    %p75 = por %p73, %p74
    %p76 = scmp.ne.s32.totalorder %s67, %s68
    %p77 = scmp.eq.s32.totalorder %s15, 0
    %p78 = por %p76, %p77
    %p79 = scmp.ne.s32.totalorder %s67, %s68
    %p80 = scmp.eq.s32.totalorder %s16, 1
    %p81 = por %p79, %p80
    %p83 = scmp.ne.s32.totalorder %s68, %s82
    %p84 = scmp.eq.s32.totalorder %s16, 0
    %p85 = por %p83, %p84
    %s87 = sadd.s32 %s86, 1
    %p90 = scmp.eq.s32.totalorder %s10, 1
    %p91 = scmp.ne.s32.totalorder %s86, %s88
    %p92 = scmp.eq.s32.totalorder %s10, 0
    %p93 = por %p91, %p92
    %p94 = scmp.ne.s32.totalorder %s86, %s88
    %p95 = scmp.eq.s32.totalorder %s15, 1
    %p96 = por %p94, %p95
    %p97 = scmp.ne.s32.totalorder %s88, %s89
    %p98 = scmp.eq.s32.totalorder %s15, 0
    %p99 = por %p97, %p98
    %p100 = scmp.ne.s32.totalorder %s88, %s89
    %p101 = scmp.eq.s32.totalorder %s16, 1
    %p102 = por %p100, %p101
    %p104 = scmp.ne.s32.totalorder %s89, %s103
    %p105 = scmp.eq.s32.totalorder %s16, 0
    %p106 = por %p104, %p105
    %s107 = ssub.s32 %s10, %s17
    %p108 = scmp.eq.s32.totalorder %s107, 0
    %s110 = sadd.s32 %s109, 1
    %s111 = scalar_select %p108, %s109, %s110
    %p114 = pneg %p108
    %p115 = scmp.eq.s32.totalorder %s10, 1
    %p116 = por %p114, %p115
    %p117 = scmp.ne.s32.totalorder %s109, %s112
    %p118 = scmp.eq.s32.totalorder %s10, 0
    %p119 = por %p117, %p118
    %p120 = scmp.ne.s32.totalorder %s109, %s112
    %p121 = scmp.eq.s32.totalorder %s15, 1
    %p122 = por %p120, %p121
    %p123 = scmp.ne.s32.totalorder %s112, %s113
    %p124 = scmp.eq.s32.totalorder %s15, 0
    %p125 = por %p123, %p124
    %p126 = scmp.ne.s32.totalorder %s112, %s113
    %p127 = scmp.eq.s32.totalorder %s16, 1
    %p128 = por %p126, %p127
    %p130 = scmp.ne.s32.totalorder %s113, %s129
    %p131 = scmp.eq.s32.totalorder %s16, 0
    %p132 = por %p130, %p131
    %p133 = scmp.le.s32.totalorder 1, %s10
    %p134 = scmp.lt.s32.totalorder %s10, 3
    %p135 = pnand %p133, %p134
    %p136 = pneg %p135
    // Predicated region
    $region9: #{vqa_conv_abstract_forward.2} parent=5 // pred_check
      _
    $region10: #{vqa_conv_abstract_forward.2} parent=5 // pred_check_branch
      %138 = sbr.rel (%p135) target = $region12
    $region11: #{vqa_conv_abstract_forward.2} parent=5 // pred_region
      %s139 = ssub.s32 %s10, 1
      // Predicated region
      $region13: #{vqa_conv_abstract_forward.2} parent=11 // pred_check
        %p140 = pneg %p57
      $region14: #{vqa_conv_abstract_forward.2} parent=11 // pred_check_branch
        %142 = sbr.rel (%p140) target = $region16
      $region15: #{vqa_conv_abstract_forward.2} parent=11 // pred_region
        _
      $region16: #{vqa_conv_abstract_forward.2} parent=11 // pred_fallthru
        _
      // Predicated region
      $region17: #{vqa_conv_abstract_forward.2} parent=11 // pred_check
        %p143 = pneg %p78
      $region18: #{vqa_conv_abstract_forward.2} parent=11 // pred_check_branch
        %145 = sbr.rel (%p143) target = $region20
      $region19: #{vqa_conv_abstract_forward.2} parent=11 // pred_region
        _
      $region20: #{vqa_conv_abstract_forward.2} parent=11 // pred_fallthru
        _
      // Predicated region
      $region21: #{vqa_conv_abstract_forward.2} parent=11 // pred_check
        %p146 = pneg %p99
      $region22: #{vqa_conv_abstract_forward.2} parent=11 // pred_check_branch
        %148 = sbr.rel (%p146) target = $region24
      $region23: #{vqa_conv_abstract_forward.2} parent=11 // pred_region
        _
      $region24: #{vqa_conv_abstract_forward.2} parent=11 // pred_fallthru
        _
    $region12: #{vqa_conv_abstract_forward.2} parent=5 // pred_fallthru
      _
    %p149 = scmp.lt.s32.totalorder %s10, 2
    // Predicated region
    $region25: #{vqa_conv_abstract_forward.2} parent=5 // pred_check
      %p150 = pneg %p149
    $region26: #{vqa_conv_abstract_forward.2} parent=5 // pred_check_branch
      %152 = sbr.rel (%p150) target = $region28
    $region27: #{vqa_conv_abstract_forward.2} parent=5 // pred_region
      // Predicated region
      $region29: #{vqa_conv_abstract_forward.2} parent=27 // pred_check
        %p153 = pneg %p30
      $region30: #{vqa_conv_abstract_forward.2} parent=27 // pred_check_branch
        %155 = sbr.rel (%p153) target = $region32
      $region31: #{vqa_conv_abstract_forward.2} parent=27 // pred_region
        %p156 = scmp.lt.s32.totalorder %s10, 1
        %s157 = scalar_select %p156, %s10, 1
        %s158 = smul.addr %s157, 41
        %s159 = smul.addr %s158, 4
        %s160 = scalar_lea.vmem %s0, %s159
      $region32: #{vqa_conv_abstract_forward.2} parent=27 // pred_fallthru
        _
    $region28: #{vqa_conv_abstract_forward.2} parent=5 // pred_fallthru
      _
    %p161 = scmp.le.s32.totalorder 1, %s10
    %p162 = scmp.lt.s32.totalorder %s10, 3
    %p163 = pnand %p161, %p162
    %p164 = pneg %p163
    // Predicated region
    $region33: #{vqa_conv_abstract_forward.2} parent=5 // pred_check
      _
    $region34: #{vqa_conv_abstract_forward.2} parent=5 // pred_check_branch
      %166 = sbr.rel (%p163) target = $region36
    $region35: #{vqa_conv_abstract_forward.2} parent=5 // pred_region
      %s167 = ssub.s32 %s10, 1
      %p168 = scmp.lt.s32.totalorder %s15, 1
      %s169 = scalar_select %p168, %s15, 1
      %s170 = smul.addr %s169, 41
      %s171 = smul.addr %s170, 4
      %s172 = scalar_lea.vmem %s0, %s171
      %p173 = pneg %p36
      %p174 = pneg %p33
      %p175 = pneg %p57
      %p176 = pneg %p54
      %p177 = pneg %p78
      %p178 = pneg %p75
      %p179 = pneg %p99
      %p180 = pneg %p96
      %p181 = pneg %p125
      %p182 = pneg %p122
      %p183 = scmp.lt.s32.totalorder %s15, 1
      %s184 = scalar_select %p183, %s15, 1
      %s185 = scalar_lea.vmem %s4, %s184
      %p186 = scmp.lt.s32.totalorder %s15, 1
      %s187 = scalar_select %p186, %s15, 1
      %s188 = smul.addr %s187, 41
      %s189 = smul.addr %s188, 4
      %s190 = scalar_lea.vmem %s0, %s189
      %p191 = scmp.lt.s32.totalorder %s15, 1
      %s192 = scalar_select %p191, %s15, 1
      %s193 = scalar_lea.vmem %s4, %s192
      %v195 = vld [vmem:[%s190] sm:$0xf]
      %v196 = vld [vmem:[%s190 + $0x4] sm:$0xf]
      %v197 = vld [vmem:[%s190 + $0x8] sm:$0xf]
      %v198 = vld [vmem:[%s190 + $0xc] sm:$0xf]
      %v199 = vld [vmem:[%s190 + $0x10] sm:$0xf]
      %v200 = vld [vmem:[%s190 + $0x14] sm:$0xf]
      %v201 = vld [vmem:[%s190 + $0x18] sm:$0xf]
      %v202 = vld [vmem:[%s190 + $0x1c] sm:$0xf]
      %v203 = vld [vmem:[%s190 + $0x20] sm:$0xf]
      %v204 = vld [vmem:[%s190 + $0x24] sm:$0xf]
      %v205 = vld [vmem:[%s190 + $0x28] sm:$0xf]
      %v206 = vld [vmem:[%s190 + $0x2c] sm:$0xf]
      %v207 = vld [vmem:[%s190 + $0x30] sm:$0xf]
      %v208 = vld [vmem:[%s190 + $0x34] sm:$0xf]
      %v209 = vld [vmem:[%s190 + $0x38] sm:$0xf]
      %v210 = vld [vmem:[%s190 + $0x3c] sm:$0xf]
      %v211 = vld [vmem:[%s190 + $0x40] sm:$0xf]
      %v212 = vld [vmem:[%s190 + $0x44] sm:$0xf]
      %v213 = vld [vmem:[%s190 + $0x48] sm:$0xf]
      %v214 = vld [vmem:[%s190 + $0x4c] sm:$0xf]
      %v215 = vld [vmem:[%s190 + $0x50] sm:$0xf]
      %v216 = vld [vmem:[%s190 + $0x54] sm:$0xf]
      %v217 = vld [vmem:[%s190 + $0x58] sm:$0xf]
      %v218 = vld [vmem:[%s190 + $0x5c] sm:$0xf]
      %v219 = vld [vmem:[%s190 + $0x60] sm:$0xf]
      %v220 = vld [vmem:[%s190 + $0x64] sm:$0xf]
      %v221 = vld [vmem:[%s190 + $0x68] sm:$0xf]
      %v222 = vld [vmem:[%s190 + $0x6c] sm:$0xf]
      %v223 = vld [vmem:[%s190 + $0x70] sm:$0xf]
      %v224 = vld [vmem:[%s190 + $0x74] sm:$0xf]
      %v225 = vld [vmem:[%s190 + $0x78] sm:$0xf]
      %v226 = vld [vmem:[%s190 + $0x7c] sm:$0xf]
      %v227 = vld [vmem:[%s190 + $0x80] sm:$0xf]
      %v228 = vld [vmem:[%s190 + $0x84] sm:$0xf]
      %v229 = vld [vmem:[%s190 + $0x88] sm:$0xf]
      %v230 = vld [vmem:[%s190 + $0x8c] sm:$0xf]
      %v231 = vld [vmem:[%s190 + $0x90] sm:$0x1]
      %v232 = vld [vmem:[%s190] sm:$0xe]
      %v233 = vld [vmem:[%s190 + $0x8] sm:$0xe]
      %v234 = vld [vmem:[%s190 + $0x90] sm:$0xf]
      %v235 = vld [vmem:[%s190 + $0x94] sm:$0xf]
      %v236 = vld [vmem:[%s190 + $0x98] sm:$0x1]
      %v237 = vld [vmem:[%s190 + $0x98] sm:$0x3]
      %v238 = vld [vmem:[%s190 + $0x8] sm:$0xc]
      %v239 = vld [vmem:[%s190 + $0x10] sm:$0xc]
      %v240 = vld [vmem:[%s190 + $0x98] sm:$0xf]
      %v241 = vld [vmem:[%s190 + $0x9c] sm:$0xf]
      %v242 = vld [vmem:[%s190 + $0xa0] sm:$0x3]
      %v243 = vld [vmem:[%s190 + $0xa0] sm:$0x7]
      %v244 = vld [vmem:[%s190 + $0x10] sm:$0x8]
      %v281 = vunpack.c.l.b16 %v195
      %v282 = vunpack.c.l.b16 %v196
      %v283 = vunpack.c.l.b16 %v197
      %v284 = vunpack.c.l.b16 %v198
      %v285 = vunpack.c.l.b16 %v199
      %v286 = vunpack.c.l.b16 %v200
      %v287 = vunpack.c.l.b16 %v201
      %v288 = vunpack.c.l.b16 %v202
      %v289 = vunpack.c.l.b16 %v203
      %v290 = vunpack.c.l.b16 %v204
      %v291 = vunpack.c.l.b16 %v205
      %v292 = vunpack.c.l.b16 %v206
      %v293 = vunpack.c.l.b16 %v207
      %v294 = vunpack.c.l.b16 %v208
      %v295 = vunpack.c.l.b16 %v209
      %v296 = vunpack.c.l.b16 %v210
      %v297 = vunpack.c.l.b16 %v211
      %v298 = vunpack.c.l.b16 %v212
      %v299 = vunpack.c.l.b16 %v213
      %v300 = vunpack.c.l.b16 %v214
      %v301 = vunpack.c.l.b16 %v215
      %v302 = vunpack.c.l.b16 %v216
      %v303 = vunpack.c.l.b16 %v217
      %v304 = vunpack.c.l.b16 %v218
      %v305 = vunpack.c.l.b16 %v219
      %v306 = vunpack.c.l.b16 %v220
      %v307 = vunpack.c.l.b16 %v221
      %v308 = vunpack.c.l.b16 %v222
      %v309 = vunpack.c.l.b16 %v223
      %v310 = vunpack.c.l.b16 %v224
      %v311 = vunpack.c.l.b16 %v225
      %v312 = vunpack.c.l.b16 %v226
      %v313 = vunpack.c.l.b16 %v227
      %v314 = vunpack.c.l.b16 %v228
      %v315 = vunpack.c.l.b16 %v229
      %v316 = vunpack.c.l.b16 %v230
      %v317 = vpack.c.b16 %v282, %v281
      %v318 = vpack.c.b16 %v284, %v283
      %v319 = vpack.c.b16 %v286, %v285
      %v320 = vpack.c.b16 %v288, %v287
      %v321 = vpack.c.b16 %v290, %v289
      %v322 = vpack.c.b16 %v292, %v291
      %v323 = vpack.c.b16 %v294, %v293
      %v324 = vpack.c.b16 %v296, %v295
      %v325 = vpack.c.b16 %v298, %v297
      %v326 = vpack.c.b16 %v300, %v299
      %v327 = vpack.c.b16 %v302, %v301
      %v328 = vpack.c.b16 %v304, %v303
      %v329 = vpack.c.b16 %v306, %v305
      %v330 = vpack.c.b16 %v308, %v307
      %v331 = vpack.c.b16 %v310, %v309
      %v332 = vpack.c.b16 %v312, %v311
      %v333 = vpack.c.b16 %v314, %v313
      %v334 = vpack.c.b16 %v316, %v315
      %v336 = vunpack.c.l.b16 %v231
      %v337 = vpack.c.b16 %v336, %v336
      %vm338 = vsmask.f32 7424
      %v340 = vshrl.u32 %v317, 16
      %v342 = vshll.u32 %v317, 16
      %v344 = vrot.slane %v342, 1
      %v345 = vor.u32 %v340, %v344
      %v347 = vshll.u32 %v318, 16
      %v349 = vrot.slane %v347, 1
      %v350 = vsel %vm338, %v345, %v349
      %v351 = vshrl.u32 %v318, 16
      %v353 = vor.u32 %v351, %v349
      %v355 = vshll.u32 %v319, 16
      %v357 = vrot.slane %v355, 1
      %v358 = vsel %vm338, %v353, %v357
      %v359 = vshrl.u32 %v319, 16
      %v361 = vor.u32 %v359, %v357
      %v363 = vshll.u32 %v320, 16
      %v365 = vrot.slane %v363, 1
      %v366 = vsel %vm338, %v361, %v365
      %v367 = vshrl.u32 %v320, 16
      %v369 = vor.u32 %v367, %v365
      %v371 = vshll.u32 %v321, 16
      %v373 = vrot.slane %v371, 1
      %v374 = vsel %vm338, %v369, %v373
      %v375 = vshrl.u32 %v321, 16
      %v377 = vor.u32 %v375, %v373
      %v379 = vshll.u32 %v322, 16
      %v381 = vrot.slane %v379, 1
      %v382 = vsel %vm338, %v377, %v381
      %v383 = vshrl.u32 %v322, 16
      %v385 = vor.u32 %v383, %v381
      %v387 = vshll.u32 %v323, 16
      %v389 = vrot.slane %v387, 1
      %v390 = vsel %vm338, %v385, %v389
      %v391 = vshrl.u32 %v323, 16
      %v393 = vor.u32 %v391, %v389
      %v395 = vshll.u32 %v324, 16
      %v397 = vrot.slane %v395, 1
      %v398 = vsel %vm338, %v393, %v397
      %v399 = vshrl.u32 %v324, 16
      %v401 = vor.u32 %v399, %v397
      %v403 = vshll.u32 %v325, 16
      %v405 = vrot.slane %v403, 1
      %v406 = vsel %vm338, %v401, %v405
      %v407 = vshrl.u32 %v325, 16
      %v409 = vor.u32 %v407, %v405
      %v411 = vshll.u32 %v326, 16
      %v413 = vrot.slane %v411, 1
      %v414 = vsel %vm338, %v409, %v413
      %v415 = vshrl.u32 %v326, 16
      %v417 = vor.u32 %v415, %v413
      %v419 = vshll.u32 %v327, 16
      %v421 = vrot.slane %v419, 1
      %v422 = vsel %vm338, %v417, %v421
      %v423 = vshrl.u32 %v327, 16
      %v425 = vor.u32 %v423, %v421
      %v427 = vshll.u32 %v328, 16
      %v429 = vrot.slane %v427, 1
      %v430 = vsel %vm338, %v425, %v429
      %v431 = vshrl.u32 %v328, 16
      %v433 = vor.u32 %v431, %v429
      %v435 = vshll.u32 %v329, 16
      %v437 = vrot.slane %v435, 1
      %v438 = vsel %vm338, %v433, %v437
      %v439 = vshrl.u32 %v329, 16
      %v441 = vor.u32 %v439, %v437
      %v443 = vshll.u32 %v330, 16
      %v445 = vrot.slane %v443, 1
      %v446 = vsel %vm338, %v441, %v445
      %v447 = vshrl.u32 %v330, 16
      %v449 = vor.u32 %v447, %v445
      %v451 = vshll.u32 %v331, 16
      %v453 = vrot.slane %v451, 1
      %v454 = vsel %vm338, %v449, %v453
      %v455 = vshrl.u32 %v331, 16
      %v457 = vor.u32 %v455, %v453
      %v459 = vshll.u32 %v332, 16
      %v461 = vrot.slane %v459, 1
      %v462 = vsel %vm338, %v457, %v461
      %v463 = vshrl.u32 %v332, 16
      %v465 = vor.u32 %v463, %v461
      %v467 = vshll.u32 %v333, 16
      %v469 = vrot.slane %v467, 1
      %v470 = vsel %vm338, %v465, %v469
      %v471 = vshrl.u32 %v333, 16
      %v473 = vor.u32 %v471, %v469
      %v475 = vshll.u32 %v334, 16
      %v477 = vrot.slane %v475, 1
      %v478 = vsel %vm338, %v473, %v477
      %v479 = vshrl.u32 %v334, 16
      %v481 = vor.u32 %v479, %v477
      %v483 = vshll.u32 %v337, 16
      %v485 = vrot.slane %v483, 1
      %v486 = vsel %vm338, %v481, %v485
      %487 = vrot.lane.b32.xlu0 %v350, 8
      %v488 = vpop.permute.xlu0 %487
      %489 = vrot.lane.b32.xlu0 %v358, 8
      %v490 = vpop.permute.xlu0 %489
      %491 = vrot.lane.b32.xlu0 %v366, 8
      %v492 = vpop.permute.xlu0 %491
      %493 = vrot.lane.b32.xlu0 %v374, 8
      %v494 = vpop.permute.xlu0 %493
      %495 = vrot.lane.b32.xlu0 %v382, 8
      %v496 = vpop.permute.xlu0 %495
      %497 = vrot.lane.b32.xlu0 %v390, 8
      %v498 = vpop.permute.xlu0 %497
      %499 = vrot.lane.b32.xlu0 %v398, 8
      %v500 = vpop.permute.xlu0 %499
      %501 = vrot.lane.b32.xlu0 %v406, 8
      %v502 = vpop.permute.xlu0 %501
      %503 = vrot.lane.b32.xlu0 %v414, 8
      %v504 = vpop.permute.xlu0 %503
      %505 = vrot.lane.b32.xlu0 %v422, 8
      %v506 = vpop.permute.xlu0 %505
      %507 = vrot.lane.b32.xlu0 %v430, 8
      %v508 = vpop.permute.xlu0 %507
      %509 = vrot.lane.b32.xlu0 %v438, 8
      %v510 = vpop.permute.xlu0 %509
      %511 = vrot.lane.b32.xlu0 %v446, 8
      %v512 = vpop.permute.xlu0 %511
      %513 = vrot.lane.b32.xlu0 %v454, 8
      %v514 = vpop.permute.xlu0 %513
      %515 = vrot.lane.b32.xlu0 %v462, 8
      %v516 = vpop.permute.xlu0 %515
      %517 = vrot.lane.b32.xlu0 %v470, 8
      %v518 = vpop.permute.xlu0 %517
      %519 = vrot.lane.b32.xlu0 %v478, 8
      %v520 = vpop.permute.xlu0 %519
      %521 = vrot.lane.b32.xlu0 %v486, 8
      %v522 = vpop.permute.xlu0 %521
      %v524 = vunpack.c.l.b16 %v232
      %v525 = vpack.c.b16 %v282, %v524
      %vm526 = vcmask 1046528
      %v527 = vrot.slane %v525, 1
      %v528 = vrot.slane %v318, 1
      %v529 = vsel %vm526, %v527, %v528
      %v530 = vrot.slane %v319, 1
      %v531 = vsel %vm526, %v528, %v530
      %v532 = vrot.slane %v320, 1
      %v533 = vsel %vm526, %v530, %v532
      %v534 = vrot.slane %v321, 1
      %v535 = vsel %vm526, %v532, %v534
      %v536 = vrot.slane %v322, 1
      %v537 = vsel %vm526, %v534, %v536
      %v538 = vrot.slane %v323, 1
      %v539 = vsel %vm526, %v536, %v538
      %v540 = vrot.slane %v324, 1
      %v541 = vsel %vm526, %v538, %v540
      %v542 = vrot.slane %v325, 1
      %v543 = vsel %vm526, %v540, %v542
      %v544 = vrot.slane %v326, 1
      %v545 = vsel %vm526, %v542, %v544
      %v546 = vrot.slane %v327, 1
      %v547 = vsel %vm526, %v544, %v546
      %v548 = vrot.slane %v328, 1
      %v549 = vsel %vm526, %v546, %v548
      %v550 = vrot.slane %v329, 1
      %v551 = vsel %vm526, %v548, %v550
      %v552 = vrot.slane %v330, 1
      %v553 = vsel %vm526, %v550, %v552
      %v554 = vrot.slane %v331, 1
      %v555 = vsel %vm526, %v552, %v554
      %v556 = vrot.slane %v332, 1
      %v557 = vsel %vm526, %v554, %v556
      %v558 = vrot.slane %v333, 1
      %v559 = vsel %vm526, %v556, %v558
      %v560 = vrot.slane %v334, 1
      %v561 = vsel %vm526, %v558, %v560
      %v562 = vrot.slane %v337, 1
      %v563 = vsel %vm526, %v560, %v562
      %564 = vrot.lane.b32.xlu0 %v529, 16
      %v565 = vpop.permute.xlu0 %564
      %566 = vrot.lane.b32.xlu0 %v531, 16
      %v567 = vpop.permute.xlu0 %566
      %568 = vrot.lane.b32.xlu0 %v533, 16
      %v569 = vpop.permute.xlu0 %568
      %570 = vrot.lane.b32.xlu0 %v535, 16
      %v571 = vpop.permute.xlu0 %570
      %572 = vrot.lane.b32.xlu0 %v537, 16
      %v573 = vpop.permute.xlu0 %572
      %574 = vrot.lane.b32.xlu0 %v539, 16
      %v575 = vpop.permute.xlu0 %574
      %576 = vrot.lane.b32.xlu0 %v541, 16
      %v577 = vpop.permute.xlu0 %576
      %578 = vrot.lane.b32.xlu0 %v543, 16
      %v579 = vpop.permute.xlu0 %578
      %580 = vrot.lane.b32.xlu0 %v545, 16
      %v581 = vpop.permute.xlu0 %580
      %582 = vrot.lane.b32.xlu0 %v547, 16
      %v583 = vpop.permute.xlu0 %582
      %584 = vrot.lane.b32.xlu0 %v549, 16
      %v585 = vpop.permute.xlu0 %584
      %586 = vrot.lane.b32.xlu0 %v551, 16
      %v587 = vpop.permute.xlu0 %586
      %588 = vrot.lane.b32.xlu0 %v553, 16
      %v589 = vpop.permute.xlu0 %588
      %590 = vrot.lane.b32.xlu0 %v555, 16
      %v591 = vpop.permute.xlu0 %590
      %592 = vrot.lane.b32.xlu0 %v557, 16
      %v593 = vpop.permute.xlu0 %592
      %594 = vrot.lane.b32.xlu0 %v559, 16
      %v595 = vpop.permute.xlu0 %594
      %596 = vrot.lane.b32.xlu0 %v561, 16
      %v597 = vpop.permute.xlu0 %596
      %598 = vrot.lane.b32.xlu0 %v563, 16
      %v599 = vpop.permute.xlu0 %598
      %v604 = vunpack.c.l.b16 %v233
      %v605 = vunpack.c.l.b16 %v234
      %v606 = vunpack.c.l.b16 %v235
      %v607 = vunpack.c.l.b16 %v236
      %v608 = vpack.c.b16 %v284, %v604
      %v609 = vpack.c.b16 %v606, %v605
      %v610 = vpack.c.b16 %v607, %v607
      %v611 = vrot.slane %v608, 1
      %v612 = vsel %vm526, %v611, %v530
      %v613 = vrot.slane %v609, 1
      %v614 = vsel %vm526, %v560, %v613
      %v615 = vrot.slane %v610, 1
      %v616 = vsel %vm526, %v613, %v615
      %617 = vrot.lane.b32.xlu0 %v612, 24
      %v618 = vpop.permute.xlu0 %617
      %619 = vrot.lane.b32.xlu0 %v533, 24
      %v620 = vpop.permute.xlu0 %619
      %621 = vrot.lane.b32.xlu0 %v535, 24
      %v622 = vpop.permute.xlu0 %621
      %623 = vrot.lane.b32.xlu0 %v537, 24
      %v624 = vpop.permute.xlu0 %623
      %625 = vrot.lane.b32.xlu0 %v539, 24
      %v626 = vpop.permute.xlu0 %625
      %627 = vrot.lane.b32.xlu0 %v541, 24
      %v628 = vpop.permute.xlu0 %627
      %629 = vrot.lane.b32.xlu0 %v543, 24
      %v630 = vpop.permute.xlu0 %629
      %631 = vrot.lane.b32.xlu0 %v545, 24
      %v632 = vpop.permute.xlu0 %631
      %633 = vrot.lane.b32.xlu0 %v547, 24
      %v634 = vpop.permute.xlu0 %633
      %635 = vrot.lane.b32.xlu0 %v549, 24
      %v636 = vpop.permute.xlu0 %635
      %637 = vrot.lane.b32.xlu0 %v551, 24
      %v638 = vpop.permute.xlu0 %637
      %639 = vrot.lane.b32.xlu0 %v553, 24
      %v640 = vpop.permute.xlu0 %639
      %641 = vrot.lane.b32.xlu0 %v555, 24
      %v642 = vpop.permute.xlu0 %641
      %643 = vrot.lane.b32.xlu0 %v557, 24
      %v644 = vpop.permute.xlu0 %643
      %645 = vrot.lane.b32.xlu0 %v559, 24
      %v646 = vpop.permute.xlu0 %645
      %647 = vrot.lane.b32.xlu0 %v561, 24
      %v648 = vpop.permute.xlu0 %647
      %649 = vrot.lane.b32.xlu0 %v614, 24
      %v650 = vpop.permute.xlu0 %649
      %651 = vrot.lane.b32.xlu0 %v616, 24
      %v652 = vpop.permute.xlu0 %651
      %v654 = vunpack.c.l.b16 %v237
      %v655 = vpack.c.b16 %v654, %v654
      %vm656 = vsmask.f32 6400
      %v658 = vshrl.u32 %v608, 16
      %v660 = vrot.slane %v658, 1
      %v661 = vshll.u32 %v608, 16
      %v663 = vrot.slane %v661, 2
      %v664 = vor.u32 %v660, %v663
      %v665 = vrot.slane %v359, 1
      %v666 = vrot.slane %v355, 2
      %v667 = vor.u32 %v665, %v666
      %v668 = vsel %vm656, %v664, %v667
      %v669 = vrot.slane %v367, 1
      %v670 = vrot.slane %v363, 2
      %v671 = vor.u32 %v669, %v670
      %v672 = vsel %vm656, %v667, %v671
      %v673 = vrot.slane %v375, 1
      %v674 = vrot.slane %v371, 2
      %v675 = vor.u32 %v673, %v674
      %v676 = vsel %vm656, %v671, %v675
      %v677 = vrot.slane %v383, 1
      %v678 = vrot.slane %v379, 2
      %v679 = vor.u32 %v677, %v678
      %v680 = vsel %vm656, %v675, %v679
      %v681 = vrot.slane %v391, 1
      %v682 = vrot.slane %v387, 2
      %v683 = vor.u32 %v681, %v682
      %v684 = vsel %vm656, %v679, %v683
      %v685 = vrot.slane %v399, 1
      %v686 = vrot.slane %v395, 2
      %v687 = vor.u32 %v685, %v686
      %v688 = vsel %vm656, %v683, %v687
      %v689 = vrot.slane %v407, 1
      %v690 = vrot.slane %v403, 2
      %v691 = vor.u32 %v689, %v690
      %v692 = vsel %vm656, %v687, %v691
      %v693 = vrot.slane %v415, 1
      %v694 = vrot.slane %v411, 2
      %v695 = vor.u32 %v693, %v694
      %v696 = vsel %vm656, %v691, %v695
      %v697 = vrot.slane %v423, 1
      %v698 = vrot.slane %v419, 2
      %v699 = vor.u32 %v697, %v698
      %v700 = vsel %vm656, %v695, %v699
      %v701 = vrot.slane %v431, 1
      %v702 = vrot.slane %v427, 2
      %v703 = vor.u32 %v701, %v702
      %v704 = vsel %vm656, %v699, %v703
      %v705 = vrot.slane %v439, 1
      %v706 = vrot.slane %v435, 2
      %v707 = vor.u32 %v705, %v706
      %v708 = vsel %vm656, %v703, %v707
      %v709 = vrot.slane %v447, 1
      %v710 = vrot.slane %v443, 2
      %v711 = vor.u32 %v709, %v710
      %v712 = vsel %vm656, %v707, %v711
      %v713 = vrot.slane %v455, 1
      %v714 = vrot.slane %v451, 2
      %v715 = vor.u32 %v713, %v714
      %v716 = vsel %vm656, %v711, %v715
      %v717 = vrot.slane %v463, 1
      %v718 = vrot.slane %v459, 2
      %v719 = vor.u32 %v717, %v718
      %v720 = vsel %vm656, %v715, %v719
      %v721 = vrot.slane %v471, 1
      %v722 = vrot.slane %v467, 2
      %v723 = vor.u32 %v721, %v722
      %v724 = vsel %vm656, %v719, %v723
      %v725 = vrot.slane %v479, 1
      %v726 = vrot.slane %v475, 2
      %v727 = vor.u32 %v725, %v726
      %v728 = vsel %vm656, %v723, %v727
      %v730 = vshrl.u32 %v609, 16
      %v732 = vrot.slane %v730, 1
      %v733 = vshll.u32 %v609, 16
      %v735 = vrot.slane %v733, 2
      %v736 = vor.u32 %v732, %v735
      %v737 = vsel %vm656, %v727, %v736
      %v739 = vshrl.u32 %v655, 16
      %v741 = vrot.slane %v739, 1
      %v742 = vshll.u32 %v655, 16
      %v744 = vrot.slane %v742, 2
      %v745 = vor.u32 %v741, %v744
      %v746 = vsel %vm656, %v736, %v745
      %747 = vrot.lane.b32.xlu0 %v668, 32
      %v748 = vpop.permute.xlu0 %747
      %749 = vrot.lane.b32.xlu0 %v672, 32
      %v750 = vpop.permute.xlu0 %749
      %751 = vrot.lane.b32.xlu0 %v676, 32
      %v752 = vpop.permute.xlu0 %751
      %753 = vrot.lane.b32.xlu0 %v680, 32
      %v754 = vpop.permute.xlu0 %753
      %755 = vrot.lane.b32.xlu0 %v684, 32
      %v756 = vpop.permute.xlu0 %755
      %757 = vrot.lane.b32.xlu0 %v688, 32
      %v758 = vpop.permute.xlu0 %757
      %759 = vrot.lane.b32.xlu0 %v692, 32
      %v760 = vpop.permute.xlu0 %759
      %761 = vrot.lane.b32.xlu0 %v696, 32
      %v762 = vpop.permute.xlu0 %761
      %763 = vrot.lane.b32.xlu0 %v700, 32
      %v764 = vpop.permute.xlu0 %763
      %765 = vrot.lane.b32.xlu0 %v704, 32
      %v766 = vpop.permute.xlu0 %765
      %767 = vrot.lane.b32.xlu0 %v708, 32
      %v768 = vpop.permute.xlu0 %767
      %769 = vrot.lane.b32.xlu0 %v712, 32
      %v770 = vpop.permute.xlu0 %769
      %771 = vrot.lane.b32.xlu0 %v716, 32
      %v772 = vpop.permute.xlu0 %771
      %773 = vrot.lane.b32.xlu0 %v720, 32
      %v774 = vpop.permute.xlu0 %773
      %775 = vrot.lane.b32.xlu0 %v724, 32
      %v776 = vpop.permute.xlu0 %775
      %777 = vrot.lane.b32.xlu0 %v728, 32
      %v778 = vpop.permute.xlu0 %777
      %779 = vrot.lane.b32.xlu0 %v737, 32
      %v780 = vpop.permute.xlu0 %779
      %781 = vrot.lane.b32.xlu0 %v746, 32
      %v782 = vpop.permute.xlu0 %781
      %v784 = vunpack.c.l.b16 %v238
      %v785 = vpack.c.b16 %v284, %v784
      %vm786 = vcmask 1045504
      %v787 = vrot.slane %v785, 2
      %v788 = vrot.slane %v319, 2
      %v789 = vsel %vm786, %v787, %v788
      %v790 = vrot.slane %v320, 2
      %v791 = vsel %vm786, %v788, %v790
      %v792 = vrot.slane %v321, 2
      %v793 = vsel %vm786, %v790, %v792
      %v794 = vrot.slane %v322, 2
      %v795 = vsel %vm786, %v792, %v794
      %v796 = vrot.slane %v323, 2
      %v797 = vsel %vm786, %v794, %v796
      %v798 = vrot.slane %v324, 2
      %v799 = vsel %vm786, %v796, %v798
      %v800 = vrot.slane %v325, 2
      %v801 = vsel %vm786, %v798, %v800
      %v802 = vrot.slane %v326, 2
      %v803 = vsel %vm786, %v800, %v802
      %v804 = vrot.slane %v327, 2
      %v805 = vsel %vm786, %v802, %v804
      %v806 = vrot.slane %v328, 2
      %v807 = vsel %vm786, %v804, %v806
      %v808 = vrot.slane %v329, 2
      %v809 = vsel %vm786, %v806, %v808
      %v810 = vrot.slane %v330, 2
      %v811 = vsel %vm786, %v808, %v810
      %v812 = vrot.slane %v331, 2
      %v813 = vsel %vm786, %v810, %v812
      %v814 = vrot.slane %v332, 2
      %v815 = vsel %vm786, %v812, %v814
      %v816 = vrot.slane %v333, 2
      %v817 = vsel %vm786, %v814, %v816
      %v818 = vrot.slane %v334, 2
      %v819 = vsel %vm786, %v816, %v818
      %v820 = vrot.slane %v609, 2
      %v821 = vsel %vm786, %v818, %v820
      %v822 = vrot.slane %v655, 2
      %v823 = vsel %vm786, %v820, %v822
      %824 = vrot.lane.b32.xlu0 %v789, 40
      %v825 = vpop.permute.xlu0 %824
      %826 = vrot.lane.b32.xlu0 %v791, 40
      %v827 = vpop.permute.xlu0 %826
      %828 = vrot.lane.b32.xlu0 %v793, 40
      %v829 = vpop.permute.xlu0 %828
      %830 = vrot.lane.b32.xlu0 %v795, 40
      %v831 = vpop.permute.xlu0 %830
      %832 = vrot.lane.b32.xlu0 %v797, 40
      %v833 = vpop.permute.xlu0 %832
      %834 = vrot.lane.b32.xlu0 %v799, 40
      %v835 = vpop.permute.xlu0 %834
      %836 = vrot.lane.b32.xlu0 %v801, 40
      %v837 = vpop.permute.xlu0 %836
      %838 = vrot.lane.b32.xlu0 %v803, 40
      %v839 = vpop.permute.xlu0 %838
      %840 = vrot.lane.b32.xlu0 %v805, 40
      %v841 = vpop.permute.xlu0 %840
      %842 = vrot.lane.b32.xlu0 %v807, 40
      %v843 = vpop.permute.xlu0 %842
      %844 = vrot.lane.b32.xlu0 %v809, 40
      %v845 = vpop.permute.xlu0 %844
      %846 = vrot.lane.b32.xlu0 %v811, 40
      %v847 = vpop.permute.xlu0 %846
      %848 = vrot.lane.b32.xlu0 %v813, 40
      %v849 = vpop.permute.xlu0 %848
      %850 = vrot.lane.b32.xlu0 %v815, 40
      %v851 = vpop.permute.xlu0 %850
      %852 = vrot.lane.b32.xlu0 %v817, 40
      %v853 = vpop.permute.xlu0 %852
      %854 = vrot.lane.b32.xlu0 %v819, 40
      %v855 = vpop.permute.xlu0 %854
      %856 = vrot.lane.b32.xlu0 %v821, 40
      %v857 = vpop.permute.xlu0 %856
      %858 = vrot.lane.b32.xlu0 %v823, 40
      %v859 = vpop.permute.xlu0 %858
      %v864 = vunpack.c.l.b16 %v239
      %v865 = vunpack.c.l.b16 %v240
      %v866 = vunpack.c.l.b16 %v241
      %v867 = vunpack.c.l.b16 %v242
      %v868 = vpack.c.b16 %v286, %v864
      %v869 = vpack.c.b16 %v866, %v865
      %v870 = vpack.c.b16 %v867, %v867
      %v871 = vrot.slane %v868, 2
      %v872 = vsel %vm786, %v871, %v790
      %v873 = vrot.slane %v869, 2
      %v874 = vsel %vm786, %v820, %v873
      %v875 = vrot.slane %v870, 2
      %v876 = vsel %vm786, %v873, %v875
      %877 = vrot.lane.b32.xlu0 %v872, 48
      %v878 = vpop.permute.xlu0 %877
      %879 = vrot.lane.b32.xlu0 %v793, 48
      %v880 = vpop.permute.xlu0 %879
      %881 = vrot.lane.b32.xlu0 %v795, 48
      %v882 = vpop.permute.xlu0 %881
      %883 = vrot.lane.b32.xlu0 %v797, 48
      %v884 = vpop.permute.xlu0 %883
      %885 = vrot.lane.b32.xlu0 %v799, 48
      %v886 = vpop.permute.xlu0 %885
      %887 = vrot.lane.b32.xlu0 %v801, 48
      %v888 = vpop.permute.xlu0 %887
      %889 = vrot.lane.b32.xlu0 %v803, 48
      %v890 = vpop.permute.xlu0 %889
      %891 = vrot.lane.b32.xlu0 %v805, 48
      %v892 = vpop.permute.xlu0 %891
      %893 = vrot.lane.b32.xlu0 %v807, 48
      %v894 = vpop.permute.xlu0 %893
      %895 = vrot.lane.b32.xlu0 %v809, 48
      %v896 = vpop.permute.xlu0 %895
      %897 = vrot.lane.b32.xlu0 %v811, 48
      %v898 = vpop.permute.xlu0 %897
      %899 = vrot.lane.b32.xlu0 %v813, 48
      %v900 = vpop.permute.xlu0 %899
      %901 = vrot.lane.b32.xlu0 %v815, 48
      %v902 = vpop.permute.xlu0 %901
      %903 = vrot.lane.b32.xlu0 %v817, 48
      %v904 = vpop.permute.xlu0 %903
      %905 = vrot.lane.b32.xlu0 %v819, 48
      %v906 = vpop.permute.xlu0 %905
      %907 = vrot.lane.b32.xlu0 %v821, 48
      %v908 = vpop.permute.xlu0 %907
      %909 = vrot.lane.b32.xlu0 %v874, 48
      %v910 = vpop.permute.xlu0 %909
      %911 = vrot.lane.b32.xlu0 %v876, 48
      %v912 = vpop.permute.xlu0 %911
      %v914 = vunpack.c.l.b16 %v243
      %v915 = vpack.c.b16 %v914, %v914
      %vm916 = vsmask.f32 5376
      %v918 = vshrl.u32 %v868, 16
      %v920 = vrot.slane %v918, 2
      %v921 = vshll.u32 %v868, 16
      %v923 = vrot.slane %v921, 3
      %v924 = vor.u32 %v920, %v923
      %v925 = vrot.slane %v367, 2
      %v926 = vrot.slane %v363, 3
      %v927 = vor.u32 %v925, %v926
      %v928 = vsel %vm916, %v924, %v927
      %v929 = vrot.slane %v375, 2
      %v930 = vrot.slane %v371, 3
      %v931 = vor.u32 %v929, %v930
      %v932 = vsel %vm916, %v927, %v931
      %v933 = vrot.slane %v383, 2
      %v934 = vrot.slane %v379, 3
      %v935 = vor.u32 %v933, %v934
      %v936 = vsel %vm916, %v931, %v935
      %v937 = vrot.slane %v391, 2
      %v938 = vrot.slane %v387, 3
      %v939 = vor.u32 %v937, %v938
      %v940 = vsel %vm916, %v935, %v939
      %v941 = vrot.slane %v399, 2
      %v942 = vrot.slane %v395, 3
      %v943 = vor.u32 %v941, %v942
      %v944 = vsel %vm916, %v939, %v943
      %v945 = vrot.slane %v407, 2
      %v946 = vrot.slane %v403, 3
      %v947 = vor.u32 %v945, %v946
      %v948 = vsel %vm916, %v943, %v947
      %v949 = vrot.slane %v415, 2
      %v950 = vrot.slane %v411, 3
      %v951 = vor.u32 %v949, %v950
      %v952 = vsel %vm916, %v947, %v951
      %v953 = vrot.slane %v423, 2
      %v954 = vrot.slane %v419, 3
      %v955 = vor.u32 %v953, %v954
      %v956 = vsel %vm916, %v951, %v955
      %v957 = vrot.slane %v431, 2
      %v958 = vrot.slane %v427, 3
      %v959 = vor.u32 %v957, %v958
      %v960 = vsel %vm916, %v955, %v959
      %v961 = vrot.slane %v439, 2
      %v962 = vrot.slane %v435, 3
      %v963 = vor.u32 %v961, %v962
      %v964 = vsel %vm916, %v959, %v963
      %v965 = vrot.slane %v447, 2
      %v966 = vrot.slane %v443, 3
      %v967 = vor.u32 %v965, %v966
      %v968 = vsel %vm916, %v963, %v967
      %v969 = vrot.slane %v455, 2
      %v970 = vrot.slane %v451, 3
      %v971 = vor.u32 %v969, %v970
      %v972 = vsel %vm916, %v967, %v971
      %v973 = vrot.slane %v463, 2
      %v974 = vrot.slane %v459, 3
      %v975 = vor.u32 %v973, %v974
      %v976 = vsel %vm916, %v971, %v975
      %v977 = vrot.slane %v471, 2
      %v978 = vrot.slane %v467, 3
      %v979 = vor.u32 %v977, %v978
      %v980 = vsel %vm916, %v975, %v979
      %v981 = vrot.slane %v479, 2
      %v982 = vrot.slane %v475, 3
      %v983 = vor.u32 %v981, %v982
      %v984 = vsel %vm916, %v979, %v983
      %v985 = vrot.slane %v730, 2
      %v986 = vrot.slane %v733, 3
      %v987 = vor.u32 %v985, %v986
      %v988 = vsel %vm916, %v983, %v987
      %v990 = vshrl.u32 %v869, 16
      %v992 = vrot.slane %v990, 2
      %v993 = vshll.u32 %v869, 16
      %v995 = vrot.slane %v993, 3
      %v996 = vor.u32 %v992, %v995
      %v997 = vsel %vm916, %v987, %v996
      %v999 = vshrl.u32 %v915, 16
      %v1001 = vrot.slane %v999, 2
      %v1002 = vshll.u32 %v915, 16
      %v1004 = vrot.slane %v1002, 3
      %v1005 = vor.u32 %v1001, %v1004
      %v1006 = vsel %vm916, %v996, %v1005
      %1007 = vrot.lane.b32.xlu0 %v928, 56
      %v1008 = vpop.permute.xlu0 %1007
      %1009 = vrot.lane.b32.xlu0 %v932, 56
      %v1010 = vpop.permute.xlu0 %1009
      %1011 = vrot.lane.b32.xlu0 %v936, 56
      %v1012 = vpop.permute.xlu0 %1011
      %1013 = vrot.lane.b32.xlu0 %v940, 56
      %v1014 = vpop.permute.xlu0 %1013
      %1015 = vrot.lane.b32.xlu0 %v944, 56
      %v1016 = vpop.permute.xlu0 %1015
      %1017 = vrot.lane.b32.xlu0 %v948, 56
      %v1018 = vpop.permute.xlu0 %1017
      %1019 = vrot.lane.b32.xlu0 %v952, 56
      %v1020 = vpop.permute.xlu0 %1019
      %1021 = vrot.lane.b32.xlu0 %v956, 56
      %v1022 = vpop.permute.xlu0 %1021
      %1023 = vrot.lane.b32.xlu0 %v960, 56
      %v1024 = vpop.permute.xlu0 %1023
      %1025 = vrot.lane.b32.xlu0 %v964, 56
      %v1026 = vpop.permute.xlu0 %1025
      %1027 = vrot.lane.b32.xlu0 %v968, 56
      %v1028 = vpop.permute.xlu0 %1027
      %1029 = vrot.lane.b32.xlu0 %v972, 56
      %v1030 = vpop.permute.xlu0 %1029
      %1031 = vrot.lane.b32.xlu0 %v976, 56
      %v1032 = vpop.permute.xlu0 %1031
      %1033 = vrot.lane.b32.xlu0 %v980, 56
      %v1034 = vpop.permute.xlu0 %1033
      %1035 = vrot.lane.b32.xlu0 %v984, 56
      %v1036 = vpop.permute.xlu0 %1035
      %1037 = vrot.lane.b32.xlu0 %v988, 56
      %v1038 = vpop.permute.xlu0 %1037
      %1039 = vrot.lane.b32.xlu0 %v997, 56
      %v1040 = vpop.permute.xlu0 %1039
      %1041 = vrot.lane.b32.xlu0 %v1006, 56
      %v1042 = vpop.permute.xlu0 %1041
      %v1044 = vunpack.c.l.b16 %v244
      %v1045 = vpack.c.b16 %v286, %v1044
      %vm1046 = vcmask 1044480
      %v1047 = vrot.slane %v1045, 3
      %v1048 = vrot.slane %v320, 3
      %v1049 = vsel %vm1046, %v1047, %v1048
      %v1050 = vrot.slane %v321, 3
      %v1051 = vsel %vm1046, %v1048, %v1050
      %v1052 = vrot.slane %v322, 3
      %v1053 = vsel %vm1046, %v1050, %v1052
      %v1054 = vrot.slane %v323, 3
      %v1055 = vsel %vm1046, %v1052, %v1054
      %v1056 = vrot.slane %v324, 3
      %v1057 = vsel %vm1046, %v1054, %v1056
      %v1058 = vrot.slane %v325, 3
      %v1059 = vsel %vm1046, %v1056, %v1058
      %v1060 = vrot.slane %v326, 3
      %v1061 = vsel %vm1046, %v1058, %v1060
      %v1062 = vrot.slane %v327, 3
      %v1063 = vsel %vm1046, %v1060, %v1062
      %v1064 = vrot.slane %v328, 3
      %v1065 = vsel %vm1046, %v1062, %v1064
      %v1066 = vrot.slane %v329, 3
      %v1067 = vsel %vm1046, %v1064, %v1066
      %v1068 = vrot.slane %v330, 3
      %v1069 = vsel %vm1046, %v1066, %v1068
      %v1070 = vrot.slane %v331, 3
      %v1071 = vsel %vm1046, %v1068, %v1070
      %v1072 = vrot.slane %v332, 3
      %v1073 = vsel %vm1046, %v1070, %v1072
      %v1074 = vrot.slane %v333, 3
      %v1075 = vsel %vm1046, %v1072, %v1074
      %v1076 = vrot.slane %v334, 3
      %v1077 = vsel %vm1046, %v1074, %v1076
      %v1078 = vrot.slane %v609, 3
      %v1079 = vsel %vm1046, %v1076, %v1078
      %v1080 = vrot.slane %v869, 3
      %v1081 = vsel %vm1046, %v1078, %v1080
      %v1082 = vrot.slane %v915, 3
      %v1083 = vsel %vm1046, %v1080, %v1082
      %1084 = vrot.lane.b32.xlu0 %v1049, 64
      %v1085 = vpop.permute.xlu0 %1084
      %1086 = vrot.lane.b32.xlu0 %v1051, 64
      %v1087 = vpop.permute.xlu0 %1086
      %1088 = vrot.lane.b32.xlu0 %v1053, 64
      %v1089 = vpop.permute.xlu0 %1088
      %1090 = vrot.lane.b32.xlu0 %v1055, 64
      %v1091 = vpop.permute.xlu0 %1090
      %1092 = vrot.lane.b32.xlu0 %v1057, 64
      %v1093 = vpop.permute.xlu0 %1092
      %1094 = vrot.lane.b32.xlu0 %v1059, 64
      %v1095 = vpop.permute.xlu0 %1094
      %1096 = vrot.lane.b32.xlu0 %v1061, 64
      %v1097 = vpop.permute.xlu0 %1096
      %1098 = vrot.lane.b32.xlu0 %v1063, 64
      %v1099 = vpop.permute.xlu0 %1098
      %1100 = vrot.lane.b32.xlu0 %v1065, 64
      %v1101 = vpop.permute.xlu0 %1100
      %1102 = vrot.lane.b32.xlu0 %v1067, 64
      %v1103 = vpop.permute.xlu0 %1102
      %1104 = vrot.lane.b32.xlu0 %v1069, 64
      %v1105 = vpop.permute.xlu0 %1104
      %1106 = vrot.lane.b32.xlu0 %v1071, 64
      %v1107 = vpop.permute.xlu0 %1106
      %1108 = vrot.lane.b32.xlu0 %v1073, 64
      %v1109 = vpop.permute.xlu0 %1108
      %1110 = vrot.lane.b32.xlu0 %v1075, 64
      %v1111 = vpop.permute.xlu0 %1110
      %1112 = vrot.lane.b32.xlu0 %v1077, 64
      %v1113 = vpop.permute.xlu0 %1112
      %1114 = vrot.lane.b32.xlu0 %v1079, 64
      %v1115 = vpop.permute.xlu0 %1114
      %1116 = vrot.lane.b32.xlu0 %v1081, 64
      %v1117 = vpop.permute.xlu0 %1116
      %1118 = vrot.lane.b32.xlu0 %v1083, 64
      %v1119 = vpop.permute.xlu0 %1118
      %vm1120 = vcmask 64512
      %v1122 = vsel %vm1120, %v317, %v488
      %v1124 = vsel %vm1120, %v318, %v490
      %v1126 = vsel %vm1120, %v319, %v492
      %v1128 = vsel %vm1120, %v320, %v494
      %v1130 = vsel %vm1120, %v321, %v496
      %v1132 = vsel %vm1120, %v322, %v498
      %v1134 = vsel %vm1120, %v323, %v500
      %v1136 = vsel %vm1120, %v324, %v502
      %v1138 = vsel %vm1120, %v325, %v504
      %v1140 = vsel %vm1120, %v326, %v506
      %v1142 = vsel %vm1120, %v327, %v508
      %v1144 = vsel %vm1120, %v328, %v510
      %v1146 = vsel %vm1120, %v329, %v512
      %v1148 = vsel %vm1120, %v330, %v514
      %v1150 = vsel %vm1120, %v331, %v516
      %v1152 = vsel %vm1120, %v332, %v518
      %v1154 = vsel %vm1120, %v333, %v520
      %v1156 = vsel %vm1120, %v334, %v522
      %vm1157 = vcmask 130048
      %v1159 = vsel %vm1157, %v1122, %v565
      %v1161 = vsel %vm1157, %v1124, %v567
      %v1163 = vsel %vm1157, %v1126, %v569
      %v1165 = vsel %vm1157, %v1128, %v571
      %v1167 = vsel %vm1157, %v1130, %v573
      %v1169 = vsel %vm1157, %v1132, %v575
      %v1171 = vsel %vm1157, %v1134, %v577
      %v1173 = vsel %vm1157, %v1136, %v579
      %v1175 = vsel %vm1157, %v1138, %v581
      %v1177 = vsel %vm1157, %v1140, %v583
      %v1179 = vsel %vm1157, %v1142, %v585
      %v1181 = vsel %vm1157, %v1144, %v587
      %v1183 = vsel %vm1157, %v1146, %v589
      %v1185 = vsel %vm1157, %v1148, %v591
      %v1187 = vsel %vm1157, %v1150, %v593
      %v1189 = vsel %vm1157, %v1152, %v595
      %v1191 = vsel %vm1157, %v1154, %v597
      %v1193 = vsel %vm1157, %v1156, %v599
      %vm1194 = vcmask 195584
      %v1196 = vsel %vm1194, %v1159, %v618
      %v1198 = vsel %vm1194, %v1161, %v620
      %v1200 = vsel %vm1194, %v1163, %v622
      %v1202 = vsel %vm1194, %v1165, %v624
      %v1204 = vsel %vm1194, %v1167, %v626
      %v1206 = vsel %vm1194, %v1169, %v628
      %v1208 = vsel %vm1194, %v1171, %v630
      %v1210 = vsel %vm1194, %v1173, %v632
      %v1212 = vsel %vm1194, %v1175, %v634
      %v1214 = vsel %vm1194, %v1177, %v636
      %v1216 = vsel %vm1194, %v1179, %v638
      %v1218 = vsel %vm1194, %v1181, %v640
      %v1220 = vsel %vm1194, %v1183, %v642
      %v1222 = vsel %vm1194, %v1185, %v644
      %v1224 = vsel %vm1194, %v1187, %v646
      %v1226 = vsel %vm1194, %v1189, %v648
      %v1228 = vsel %vm1194, %v1191, %v650
      %v1230 = vsel %vm1194, %v1193, %v652
      %vm1231 = vcmask 261120
      %v1233 = vsel %vm1231, %v1196, %v748
      %v1235 = vsel %vm1231, %v1198, %v750
      %v1237 = vsel %vm1231, %v1200, %v752
      %v1239 = vsel %vm1231, %v1202, %v754
      %v1241 = vsel %vm1231, %v1204, %v756
      %v1243 = vsel %vm1231, %v1206, %v758
      %v1245 = vsel %vm1231, %v1208, %v760
      %v1247 = vsel %vm1231, %v1210, %v762
      %v1249 = vsel %vm1231, %v1212, %v764
      %v1251 = vsel %vm1231, %v1214, %v766
      %v1253 = vsel %vm1231, %v1216, %v768
      %v1255 = vsel %vm1231, %v1218, %v770
      %v1257 = vsel %vm1231, %v1220, %v772
      %v1259 = vsel %vm1231, %v1222, %v774
      %v1261 = vsel %vm1231, %v1224, %v776
      %v1263 = vsel %vm1231, %v1226, %v778
      %v1265 = vsel %vm1231, %v1228, %v780
      %v1267 = vsel %vm1231, %v1230, %v782
      %vm1268 = vcmask 326656
      %v1270 = vsel %vm1268, %v1233, %v825
      %v1272 = vsel %vm1268, %v1235, %v827
      %v1274 = vsel %vm1268, %v1237, %v829
      %v1276 = vsel %vm1268, %v1239, %v831
      %v1278 = vsel %vm1268, %v1241, %v833
      %v1280 = vsel %vm1268, %v1243, %v835
      %v1282 = vsel %vm1268, %v1245, %v837
      %v1284 = vsel %vm1268, %v1247, %v839
      %v1286 = vsel %vm1268, %v1249, %v841
      %v1288 = vsel %vm1268, %v1251, %v843
      %v1290 = vsel %vm1268, %v1253, %v845
      %v1292 = vsel %vm1268, %v1255, %v847
      %v1294 = vsel %vm1268, %v1257, %v849
      %v1296 = vsel %vm1268, %v1259, %v851
      %v1298 = vsel %vm1268, %v1261, %v853
      %v1300 = vsel %vm1268, %v1263, %v855
      %v1302 = vsel %vm1268, %v1265, %v857
      %v1304 = vsel %vm1268, %v1267, %v859
      %vm1305 = vcmask 392192
      %v1307 = vsel %vm1305, %v1270, %v878
      %v1309 = vsel %vm1305, %v1272, %v880
      %v1311 = vsel %vm1305, %v1274, %v882
      %v1313 = vsel %vm1305, %v1276, %v884
      %v1315 = vsel %vm1305, %v1278, %v886
      %v1317 = vsel %vm1305, %v1280, %v888
      %v1319 = vsel %vm1305, %v1282, %v890
      %v1321 = vsel %vm1305, %v1284, %v892
      %v1323 = vsel %vm1305, %v1286, %v894
      %v1325 = vsel %vm1305, %v1288, %v896
      %v1327 = vsel %vm1305, %v1290, %v898
      %v1329 = vsel %vm1305, %v1292, %v900
      %v1331 = vsel %vm1305, %v1294, %v902
      %v1333 = vsel %vm1305, %v1296, %v904
      %v1335 = vsel %vm1305, %v1298, %v906
      %v1337 = vsel %vm1305, %v1300, %v908
      %v1339 = vsel %vm1305, %v1302, %v910
      %v1341 = vsel %vm1305, %v1304, %v912
      %vm1342 = vcmask 457728
      %v1344 = vsel %vm1342, %v1307, %v1008
      %v1346 = vsel %vm1342, %v1309, %v1010
      %v1348 = vsel %vm1342, %v1311, %v1012
      %v1350 = vsel %vm1342, %v1313, %v1014
      %v1352 = vsel %vm1342, %v1315, %v1016
      %v1354 = vsel %vm1342, %v1317, %v1018
      %v1356 = vsel %vm1342, %v1319, %v1020
      %v1358 = vsel %vm1342, %v1321, %v1022
      %v1360 = vsel %vm1342, %v1323, %v1024
      %v1362 = vsel %vm1342, %v1325, %v1026
      %v1364 = vsel %vm1342, %v1327, %v1028
      %v1366 = vsel %vm1342, %v1329, %v1030
      %v1368 = vsel %vm1342, %v1331, %v1032
      %v1370 = vsel %vm1342, %v1333, %v1034
      %v1372 = vsel %vm1342, %v1335, %v1036
      %v1374 = vsel %vm1342, %v1337, %v1038
      %v1376 = vsel %vm1342, %v1339, %v1040
      %v1378 = vsel %vm1342, %v1341, %v1042
      %vm1379 = vcmask 523264
      %v1381 = vsel %vm1379, %v1344, %v1085
      %v1383 = vsel %vm1379, %v1346, %v1087
      %v1385 = vsel %vm1379, %v1348, %v1089
      %v1387 = vsel %vm1379, %v1350, %v1091
      %v1389 = vsel %vm1379, %v1352, %v1093
      %v1391 = vsel %vm1379, %v1354, %v1095
      %v1393 = vsel %vm1379, %v1356, %v1097
      %v1395 = vsel %vm1379, %v1358, %v1099
      %v1397 = vsel %vm1379, %v1360, %v1101
      %v1399 = vsel %vm1379, %v1362, %v1103
      %v1401 = vsel %vm1379, %v1364, %v1105
      %v1403 = vsel %vm1379, %v1366, %v1107
      %v1405 = vsel %vm1379, %v1368, %v1109
      %v1407 = vsel %vm1379, %v1370, %v1111
      %v1409 = vsel %vm1379, %v1372, %v1113
      %v1411 = vsel %vm1379, %v1374, %v1115
      %v1413 = vsel %vm1379, %v1376, %v1117
      %v1415 = vsel %vm1379, %v1378, %v1119
      %vm1416 = vcmask 588800
      %v1418 = vsel %vm1416, %v1381, 0
      %v1420 = vsel %vm1416, %v1383, 0
      %v1422 = vsel %vm1416, %v1385, 0
      %v1424 = vsel %vm1416, %v1387, 0
      %v1426 = vsel %vm1416, %v1389, 0
      %v1428 = vsel %vm1416, %v1391, 0
      %v1430 = vsel %vm1416, %v1393, 0
      %v1432 = vsel %vm1416, %v1395, 0
      %v1434 = vsel %vm1416, %v1397, 0
      %v1436 = vsel %vm1416, %v1399, 0
      %v1438 = vsel %vm1416, %v1401, 0
      %v1440 = vsel %vm1416, %v1403, 0
      %v1442 = vsel %vm1416, %v1405, 0
      %v1444 = vsel %vm1416, %v1407, 0
      %v1446 = vsel %vm1416, %v1409, 0
      %v1448 = vsel %vm1416, %v1411, 0
      %v1450 = vsel %vm1416, %v1413, 0
      %v1452 = vsel %vm1416, %v1415, 0
      %v1454 = vld [vmem:[%s1] sm:$0xf]
      %v1455 = vld [vmem:[%s1 + $0x4] sm:$0xf]
      %v1456 = vld [vmem:[%s1 + $0x8] sm:$0xf]
      %v1457 = vld [vmem:[%s1 + $0xc] sm:$0xf]
      %v1458 = vld [vmem:[%s1 + $0x10] sm:$0xf]
      %v1459 = vld [vmem:[%s1 + $0x14] sm:$0xf]
      %v1460 = vld [vmem:[%s1 + $0x18] sm:$0xf]
      %v1461 = vld [vmem:[%s1 + $0x1c] sm:$0xf]
      %v1462 = vld [vmem:[%s1 + $0x20] sm:$0xf]
      %v1463 = vld [vmem:[%s1 + $0x24] sm:$0xf]
      %v1464 = vld [vmem:[%s1 + $0x28] sm:$0xf]
      %v1465 = vld [vmem:[%s1 + $0x2c] sm:$0xf]
      %v1466 = vld [vmem:[%s1 + $0x30] sm:$0xf]
      %v1467 = vld [vmem:[%s1 + $0x34] sm:$0xf]
      %v1468 = vld [vmem:[%s1 + $0x38] sm:$0xf]
      %v1469 = vld [vmem:[%s1 + $0x3c] sm:$0xf]
      %v1470 = vld [vmem:[%s2] sm:$0x1]
      %v1472 = vlaneseq
      %v1473 = vshrl.u32 %v1472, 7
      %v1474 = vsub.s32 0, %v1473
      %v1475 = vrot.slane %v1470, %v1474
      %v1493 = vunpack.c.l.b16 %v1454
      %v1494 = vunpack.c.l.b16 %v1455
      %v1495 = vunpack.c.l.b16 %v1456
      %v1496 = vunpack.c.l.b16 %v1457
      %v1497 = vunpack.c.l.b16 %v1458
      %v1498 = vunpack.c.l.b16 %v1459
      %v1499 = vunpack.c.l.b16 %v1460
      %v1500 = vunpack.c.l.b16 %v1461
      %v1501 = vunpack.c.l.b16 %v1462
      %v1502 = vunpack.c.l.b16 %v1463
      %v1503 = vunpack.c.l.b16 %v1464
      %v1504 = vunpack.c.l.b16 %v1465
      %v1505 = vunpack.c.l.b16 %v1466
      %v1506 = vunpack.c.l.b16 %v1467
      %v1507 = vunpack.c.l.b16 %v1468
      %v1508 = vunpack.c.l.b16 %v1469
      %v1509 = vpack.c.b16 %v1494, %v1493
      %v1510 = vpack.c.b16 %v1496, %v1495
      %v1511 = vpack.c.b16 %v1498, %v1497
      %v1512 = vpack.c.b16 %v1500, %v1499
      %v1513 = vpack.c.b16 %v1502, %v1501
      %v1514 = vpack.c.b16 %v1504, %v1503
      %v1515 = vpack.c.b16 %v1506, %v1505
      %v1516 = vpack.c.b16 %v1508, %v1507
      %1525 = vmatprep.subr.bf16.mxu0 0
      %1526 = vmatpush1.bf16.msra.mxu0 %v1516
      %1527 = vmatprep.subr.bf16.mxu0 0
      %1528 = vmatpush1.bf16.msra.mxu0 %v1515
      %1529 = vmatprep.subr.bf16.mxu0 0
      %1530 = vmatpush1.bf16.msra.mxu0 %v1514
      %1531 = vmatprep.subr.bf16.mxu0 0
      %1532 = vmatpush1.bf16.msra.mxu0 %v1513
      %1533 = vmatprep.subr.bf16.mxu0 0
      %1534 = vmatpush1.bf16.msra.mxu0 %v1512
      %1535 = vmatprep.subr.bf16.mxu0 0
      %1536 = vmatpush1.bf16.msra.mxu0 %v1511
      %1537 = vmatprep.subr.bf16.mxu0 0
      %1538 = vmatpush1.bf16.msra.mxu0 %v1510
      %1539 = vmatprep.subr.bf16.mxu0 0
      %1540 = vmatpush1.bf16.msra.mxu0 %v1509
      %1541 = vmatprep.subr.bf16.mxu0 0
      %1542 = vmatpush2.bf16.msra.mxu0 0
      %1543 = vmatprep.subr.bf16.mxu0 0
      %1544 = vmatpush2.bf16.msra.mxu0 0
      %1545 = vmatprep.subr.bf16.mxu0 0
      %1546 = vmatpush2.bf16.msra.mxu0 0
      %1547 = vmatprep.subr.bf16.mxu0 0
      %1548 = vmatpush2.bf16.msra.mxu0 0
      %1549 = vmatprep.subr.bf16.mxu0 0
      %1550 = vmatpush2.bf16.msra.mxu0 0
      %1551 = vmatprep.subr.bf16.mxu0 0
      %1552 = vmatpush2.bf16.msra.mxu0 0
      %1553 = vmatprep.subr.bf16.mxu0 0
      %1554 = vmatpush2.bf16.msra.mxu0 0
      %1555 = vmatprep.subr.bf16.mxu0 0
      %1556 = vmatpush2.bf16.msra.mxu0 0
      %1557 = vmatprep.mubr.bf16.mxu0 0
      %1558 = vmatmul.mubr.bf16.gmra.mxu0 %v1418
      %v1559 = vpop.f32.mrf.mxu0
      %v1560 = vadd.f32 %v1475, %v1559
      %v1561 = vpop.f32.mrf.mxu0
      %v1562 = vpop.f32.mrf.mxu0
      %v1563 = vadd.f32 %v1475, %v1562
      %v1564 = vpop.f32.mrf.mxu0
      %1565 = vmatprep.mubr.bf16.mxu0 0
      %1566 = vmatmul.mubr.bf16.gmra.mxu0 %v1420
      %v1567 = vpop.f32.mrf.mxu0
      %v1568 = vadd.f32 %v1475, %v1567
      %v1569 = vpop.f32.mrf.mxu0
      %v1570 = vpop.f32.mrf.mxu0
      %v1571 = vadd.f32 %v1475, %v1570
      %v1572 = vpop.f32.mrf.mxu0
      %1573 = vmatprep.mubr.bf16.mxu0 0
      %1574 = vmatmul.mubr.bf16.gmra.mxu0 %v1422
      %v1575 = vpop.f32.mrf.mxu0
      %v1576 = vadd.f32 %v1475, %v1575
      %v1577 = vpop.f32.mrf.mxu0
      %v1578 = vpop.f32.mrf.mxu0
      %v1579 = vadd.f32 %v1475, %v1578
      %v1580 = vpop.f32.mrf.mxu0
      %1581 = vmatprep.mubr.bf16.mxu0 0
      %1582 = vmatmul.mubr.bf16.gmra.mxu0 %v1424
      %v1583 = vpop.f32.mrf.mxu0
      %v1584 = vadd.f32 %v1475, %v1583
      %v1585 = vpop.f32.mrf.mxu0
      %v1586 = vpop.f32.mrf.mxu0
      %v1587 = vadd.f32 %v1475, %v1586
      %v1588 = vpop.f32.mrf.mxu0
      %1589 = vmatprep.mubr.bf16.mxu0 0
      %1590 = vmatmul.mubr.bf16.gmra.mxu0 %v1426
      %v1591 = vpop.f32.mrf.mxu0
      %v1592 = vadd.f32 %v1475, %v1591
      %v1593 = vpop.f32.mrf.mxu0
      %v1594 = vpop.f32.mrf.mxu0
      %v1595 = vadd.f32 %v1475, %v1594
      %v1596 = vpop.f32.mrf.mxu0
      %1597 = vmatprep.mubr.bf16.mxu0 0
      %1598 = vmatmul.mubr.bf16.gmra.mxu0 %v1428
      %v1599 = vpop.f32.mrf.mxu0
      %v1600 = vadd.f32 %v1475, %v1599
      %v1601 = vpop.f32.mrf.mxu0
      %v1602 = vpop.f32.mrf.mxu0
      %v1603 = vadd.f32 %v1475, %v1602
      %v1604 = vpop.f32.mrf.mxu0
      %1605 = vmatprep.mubr.bf16.mxu0 0
      %1606 = vmatmul.mubr.bf16.gmra.mxu0 %v1430
      %v1607 = vpop.f32.mrf.mxu0
      %v1608 = vadd.f32 %v1475, %v1607
      %v1609 = vpop.f32.mrf.mxu0
      %v1610 = vpop.f32.mrf.mxu0
      %v1611 = vadd.f32 %v1475, %v1610
      %v1612 = vpop.f32.mrf.mxu0
      %1613 = vmatprep.mubr.bf16.mxu0 0
      %1614 = vmatmul.mubr.bf16.gmra.mxu0 %v1432
      %v1615 = vpop.f32.mrf.mxu0
      %v1616 = vadd.f32 %v1475, %v1615
      %v1617 = vpop.f32.mrf.mxu0
      %v1618 = vpop.f32.mrf.mxu0
      %v1619 = vadd.f32 %v1475, %v1618
      %v1620 = vpop.f32.mrf.mxu0
      %1621 = vmatprep.mubr.bf16.mxu0 0
      %1622 = vmatmul.mubr.bf16.gmra.mxu0 %v1434
      %v1623 = vpop.f32.mrf.mxu0
      %v1624 = vadd.f32 %v1475, %v1623
      %v1625 = vpop.f32.mrf.mxu0
      %v1626 = vpop.f32.mrf.mxu0
      %v1627 = vadd.f32 %v1475, %v1626
      %v1628 = vpop.f32.mrf.mxu0
      %1629 = vmatprep.mubr.bf16.mxu0 0
      %1630 = vmatmul.mubr.bf16.gmra.mxu0 %v1436
      %v1631 = vpop.f32.mrf.mxu0
      %v1632 = vadd.f32 %v1475, %v1631
      %v1633 = vpop.f32.mrf.mxu0
      %v1634 = vpop.f32.mrf.mxu0
      %v1635 = vadd.f32 %v1475, %v1634
      %v1636 = vpop.f32.mrf.mxu0
      %1637 = vmatprep.mubr.bf16.mxu0 0
      %1638 = vmatmul.mubr.bf16.gmra.mxu0 %v1438
      %v1639 = vpop.f32.mrf.mxu0
      %v1640 = vadd.f32 %v1475, %v1639
      %v1641 = vpop.f32.mrf.mxu0
      %v1642 = vpop.f32.mrf.mxu0
      %v1643 = vadd.f32 %v1475, %v1642
      %v1644 = vpop.f32.mrf.mxu0
      %1645 = vmatprep.mubr.bf16.mxu0 0
      %1646 = vmatmul.mubr.bf16.gmra.mxu0 %v1440
      %v1647 = vpop.f32.mrf.mxu0
      %v1648 = vadd.f32 %v1475, %v1647
      %v1649 = vpop.f32.mrf.mxu0
      %v1650 = vpop.f32.mrf.mxu0
      %v1651 = vadd.f32 %v1475, %v1650
      %v1652 = vpop.f32.mrf.mxu0
      %1653 = vmatprep.mubr.bf16.mxu0 0
      %1654 = vmatmul.mubr.bf16.gmra.mxu0 %v1442
      %v1655 = vpop.f32.mrf.mxu0
      %v1656 = vadd.f32 %v1475, %v1655
      %v1657 = vpop.f32.mrf.mxu0
      %v1658 = vpop.f32.mrf.mxu0
      %v1659 = vadd.f32 %v1475, %v1658
      %v1660 = vpop.f32.mrf.mxu0
      %1661 = vmatprep.mubr.bf16.mxu0 0
      %1662 = vmatmul.mubr.bf16.gmra.mxu0 %v1444
      %v1663 = vpop.f32.mrf.mxu0
      %v1664 = vadd.f32 %v1475, %v1663
      %v1665 = vpop.f32.mrf.mxu0
      %v1666 = vpop.f32.mrf.mxu0
      %v1667 = vadd.f32 %v1475, %v1666
      %v1668 = vpop.f32.mrf.mxu0
      %1669 = vmatprep.mubr.bf16.mxu0 0
      %1670 = vmatmul.mubr.bf16.gmra.mxu0 %v1446
      %v1671 = vpop.f32.mrf.mxu0
      %v1672 = vadd.f32 %v1475, %v1671
      %v1673 = vpop.f32.mrf.mxu0
      %v1674 = vpop.f32.mrf.mxu0
      %v1675 = vadd.f32 %v1475, %v1674
      %v1676 = vpop.f32.mrf.mxu0
      %1677 = vmatprep.mubr.bf16.mxu0 0
      %1678 = vmatmul.mubr.bf16.gmra.mxu0 %v1448
      %v1679 = vpop.f32.mrf.mxu0
      %v1680 = vadd.f32 %v1475, %v1679
      %v1681 = vpop.f32.mrf.mxu0
      %v1682 = vpop.f32.mrf.mxu0
      %v1683 = vadd.f32 %v1475, %v1682
      %v1684 = vpop.f32.mrf.mxu0
      %1685 = vmatprep.mubr.bf16.mxu0 0
      %1686 = vmatmul.mubr.bf16.gmra.mxu0 %v1450
      %v1687 = vpop.f32.mrf.mxu0
      %v1688 = vadd.f32 %v1475, %v1687
      %v1689 = vpop.f32.mrf.mxu0
      %v1690 = vpop.f32.mrf.mxu0
      %v1691 = vadd.f32 %v1475, %v1690
      %v1692 = vpop.f32.mrf.mxu0
      %1693 = vmatprep.mubr.bf16.mxu0 0
      %1694 = vmatmul.mubr.bf16.gmra.mxu0 %v1452
      %v1695 = vpop.f32.mrf.mxu0
      %v1696 = vadd.f32 %v1475, %v1695
      %v1697 = vpop.f32.mrf.mxu0
      %v1698 = vpop.f32.mrf.mxu0
      %v1699 = vadd.f32 %v1475, %v1698
      %v1700 = vpop.f32.mrf.mxu0
      %1701 = vdwg.mxu0
      %v1702 = vmax.f32 %v1560, 0.0
      %v1703 = vmax.f32 %v1563, 0.0
      %v1704 = vmax.f32 %v1568, 0.0
      %v1705 = vmax.f32 %v1571, 0.0
      %v1706 = vmax.f32 %v1576, 0.0
      %v1707 = vmax.f32 %v1579, 0.0
      %v1708 = vmax.f32 %v1584, 0.0
      %v1709 = vmax.f32 %v1587, 0.0
      %v1710 = vmax.f32 %v1592, 0.0
      %v1711 = vmax.f32 %v1595, 0.0
      %v1712 = vmax.f32 %v1600, 0.0
      %v1713 = vmax.f32 %v1603, 0.0
      %v1714 = vmax.f32 %v1608, 0.0
      %v1715 = vmax.f32 %v1611, 0.0
      %v1716 = vmax.f32 %v1616, 0.0
      %v1717 = vmax.f32 %v1619, 0.0
      %v1718 = vmax.f32 %v1624, 0.0
      %v1719 = vmax.f32 %v1627, 0.0
      %v1720 = vmax.f32 %v1632, 0.0
      %v1721 = vmax.f32 %v1635, 0.0
      %v1722 = vmax.f32 %v1640, 0.0
      %v1723 = vmax.f32 %v1643, 0.0
      %v1724 = vmax.f32 %v1648, 0.0
      %v1725 = vmax.f32 %v1651, 0.0
      %v1726 = vmax.f32 %v1656, 0.0
      %v1727 = vmax.f32 %v1659, 0.0
      %v1728 = vmax.f32 %v1664, 0.0
      %v1729 = vmax.f32 %v1667, 0.0
      %v1730 = vmax.f32 %v1672, 0.0
      %v1731 = vmax.f32 %v1675, 0.0
      %v1732 = vmax.f32 %v1680, 0.0
      %v1733 = vmax.f32 %v1683, 0.0
      %v1734 = vmax.f32 %v1688, 0.0
      %v1735 = vmax.f32 %v1691, 0.0
      %v1736 = vmax.f32 %v1696, 0.0
      %v1737 = vmax.f32 %v1699, 0.0
      %v1738 = vld [vmem:[%s3] sm:$0xff]
      %v1739 = vld [vmem:[%s3 + $0x8] sm:$0xff]
      %v1740 = vld [vmem:[%s3 + $0x10] sm:$0xff]
      %v1741 = vld [vmem:[%s3 + $0x18] sm:$0xff]
      %v1742 = vld [vmem:[%s3 + $0x20] sm:$0xff]
      %v1743 = vld [vmem:[%s3 + $0x28] sm:$0xff]
      %v1744 = vld [vmem:[%s3 + $0x30] sm:$0xff]
      %v1745 = vld [vmem:[%s3 + $0x38] sm:$0xff]
      %v1746 = vld [vmem:[%s3 + $0x40] sm:$0xff]
      %v1747 = vld [vmem:[%s3 + $0x48] sm:$0xff]
      %v1748 = vld [vmem:[%s3 + $0x50] sm:$0xff]
      %v1749 = vld [vmem:[%s3 + $0x58] sm:$0xff]
      %v1750 = vld [vmem:[%s3 + $0x60] sm:$0xff]
      %v1751 = vld [vmem:[%s3 + $0x68] sm:$0xff]
      %v1752 = vld [vmem:[%s3 + $0x70] sm:$0xff]
      %v1753 = vld [vmem:[%s3 + $0x78] sm:$0xff]
      %v1754 = vld [vmem:[%s3 + $0x80] sm:$0xff]
      %v1755 = vld [vmem:[%s3 + $0x88] sm:$0xff]
      %v1756 = vld [vmem:[%s3 + $0x90] sm:$0xff]
      %v1757 = vld [vmem:[%s3 + $0x98] sm:$0xff]
      %v1758 = vld [vmem:[%s3 + $0xa0] sm:$0xff]
      %v1759 = vld [vmem:[%s3 + $0xa8] sm:$0xff]
      %v1760 = vld [vmem:[%s3 + $0xb0] sm:$0xff]
      %v1761 = vld [vmem:[%s3 + $0xb8] sm:$0xff]
      %v1762 = vld [vmem:[%s3 + $0xc0] sm:$0xff]
      %v1763 = vld [vmem:[%s3 + $0xc8] sm:$0xff]
      %v1764 = vld [vmem:[%s3 + $0xd0] sm:$0xff]
      %v1765 = vld [vmem:[%s3 + $0xd8] sm:$0xff]
      %v1766 = vld [vmem:[%s3 + $0xe0] sm:$0xff]
      %v1767 = vld [vmem:[%s3 + $0xe8] sm:$0xff]
      %v1768 = vld [vmem:[%s3 + $0xf0] sm:$0xff]
      %v1769 = vld [vmem:[%s3 + $0xf8] sm:$0xff]
      %v1770 = vld [vmem:[%s3 + $0x100] sm:$0xff]
      %v1771 = vld [vmem:[%s3 + $0x108] sm:$0xff]
      %v1772 = vld [vmem:[%s3 + $0x110] sm:$0xff]
      %v1773 = vld [vmem:[%s3 + $0x118] sm:$0xff]
      %1775 = vset.pattern.permute.xlu0 0
      %1776 = vperm.xlu0 %1775, %v1738
      %v1777 = vpop.permute.xlu0 %1776
      %1780 = vset.pattern.permute.xlu0 0
      %1781 = vperm.xlu0 %1780, %v1739
      %v1782 = vpop.permute.xlu0 %1781
      %1785 = vset.pattern.permute.xlu0 0
      %1786 = vperm.xlu0 %1785, %v1740
      %v1787 = vpop.permute.xlu0 %1786
      %1790 = vset.pattern.permute.xlu0 0
      %1791 = vperm.xlu0 %1790, %v1741
      %v1792 = vpop.permute.xlu0 %1791
      %1795 = vset.pattern.permute.xlu0 0
      %1796 = vperm.xlu0 %1795, %v1742
      %v1797 = vpop.permute.xlu0 %1796
      %1800 = vset.pattern.permute.xlu0 0
      %1801 = vperm.xlu0 %1800, %v1743
      %v1802 = vpop.permute.xlu0 %1801
      %1805 = vset.pattern.permute.xlu0 0
      %1806 = vperm.xlu0 %1805, %v1744
      %v1807 = vpop.permute.xlu0 %1806
      %1810 = vset.pattern.permute.xlu0 0
      %1811 = vperm.xlu0 %1810, %v1745
      %v1812 = vpop.permute.xlu0 %1811
      %1815 = vset.pattern.permute.xlu0 0
      %1816 = vperm.xlu0 %1815, %v1746
      %v1817 = vpop.permute.xlu0 %1816
      %1820 = vset.pattern.permute.xlu0 0
      %1821 = vperm.xlu0 %1820, %v1747
      %v1822 = vpop.permute.xlu0 %1821
      %1825 = vset.pattern.permute.xlu0 0
      %1826 = vperm.xlu0 %1825, %v1748
      %v1827 = vpop.permute.xlu0 %1826
      %1830 = vset.pattern.permute.xlu0 0
      %1831 = vperm.xlu0 %1830, %v1749
      %v1832 = vpop.permute.xlu0 %1831
      %1835 = vset.pattern.permute.xlu0 0
      %1836 = vperm.xlu0 %1835, %v1750
      %v1837 = vpop.permute.xlu0 %1836
      %1840 = vset.pattern.permute.xlu0 0
      %1841 = vperm.xlu0 %1840, %v1751
      %v1842 = vpop.permute.xlu0 %1841
      %1845 = vset.pattern.permute.xlu0 0
      %1846 = vperm.xlu0 %1845, %v1752
      %v1847 = vpop.permute.xlu0 %1846
      %1850 = vset.pattern.permute.xlu0 0
      %1851 = vperm.xlu0 %1850, %v1753
      %v1852 = vpop.permute.xlu0 %1851
      %1855 = vset.pattern.permute.xlu0 0
      %1856 = vperm.xlu0 %1855, %v1754
      %v1857 = vpop.permute.xlu0 %1856
      %1860 = vset.pattern.permute.xlu0 0
      %1861 = vperm.xlu0 %1860, %v1755
      %v1862 = vpop.permute.xlu0 %1861
      %1865 = vset.pattern.permute.xlu0 0
      %1866 = vperm.xlu0 %1865, %v1756
      %v1867 = vpop.permute.xlu0 %1866
      %1870 = vset.pattern.permute.xlu0 0
      %1871 = vperm.xlu0 %1870, %v1757
      %v1872 = vpop.permute.xlu0 %1871
      %1875 = vset.pattern.permute.xlu0 0
      %1876 = vperm.xlu0 %1875, %v1758
      %v1877 = vpop.permute.xlu0 %1876
      %1880 = vset.pattern.permute.xlu0 0
      %1881 = vperm.xlu0 %1880, %v1759
      %v1882 = vpop.permute.xlu0 %1881
      %1885 = vset.pattern.permute.xlu0 0
      %1886 = vperm.xlu0 %1885, %v1760
      %v1887 = vpop.permute.xlu0 %1886
      %1890 = vset.pattern.permute.xlu0 0
      %1891 = vperm.xlu0 %1890, %v1761
      %v1892 = vpop.permute.xlu0 %1891
      %1895 = vset.pattern.permute.xlu0 0
      %1896 = vperm.xlu0 %1895, %v1762
      %v1897 = vpop.permute.xlu0 %1896
      %1900 = vset.pattern.permute.xlu0 0
      %1901 = vperm.xlu0 %1900, %v1763
      %v1902 = vpop.permute.xlu0 %1901
      %1905 = vset.pattern.permute.xlu0 0
      %1906 = vperm.xlu0 %1905, %v1764
      %v1907 = vpop.permute.xlu0 %1906
      %1910 = vset.pattern.permute.xlu0 0
      %1911 = vperm.xlu0 %1910, %v1765
      %v1912 = vpop.permute.xlu0 %1911
      %1915 = vset.pattern.permute.xlu0 0
      %1916 = vperm.xlu0 %1915, %v1766
      %v1917 = vpop.permute.xlu0 %1916
      %1920 = vset.pattern.permute.xlu0 0
      %1921 = vperm.xlu0 %1920, %v1767
      %v1922 = vpop.permute.xlu0 %1921
      %1925 = vset.pattern.permute.xlu0 0
      %1926 = vperm.xlu0 %1925, %v1768
      %v1927 = vpop.permute.xlu0 %1926
      %1930 = vset.pattern.permute.xlu0 0
      %1931 = vperm.xlu0 %1930, %v1769
      %v1932 = vpop.permute.xlu0 %1931
      %1935 = vset.pattern.permute.xlu0 0
      %1936 = vperm.xlu0 %1935, %v1770
      %v1937 = vpop.permute.xlu0 %1936
      %1940 = vset.pattern.permute.xlu0 0
      %1941 = vperm.xlu0 %1940, %v1771
      %v1942 = vpop.permute.xlu0 %1941
      %1945 = vset.pattern.permute.xlu0 0
      %1946 = vperm.xlu0 %1945, %v1772
      %v1947 = vpop.permute.xlu0 %1946
      %1950 = vset.pattern.permute.xlu0 0
      %1951 = vperm.xlu0 %1950, %v1773
      %v1952 = vpop.permute.xlu0 %1951
      %v1954 = vmul.f32 %v1702, %v1777
      %v1955 = vmul.f32 %v1703, %v1782
      %v1956 = vmul.f32 %v1704, %v1787
      %v1957 = vmul.f32 %v1705, %v1792
      %v1958 = vmul.f32 %v1706, %v1797
      %v1959 = vmul.f32 %v1707, %v1802
      %v1960 = vmul.f32 %v1708, %v1807
      %v1961 = vmul.f32 %v1709, %v1812
      %v1962 = vmul.f32 %v1710, %v1817
      %v1963 = vmul.f32 %v1711, %v1822
      %v1964 = vmul.f32 %v1712, %v1827
      %v1965 = vmul.f32 %v1713, %v1832
      %v1966 = vmul.f32 %v1714, %v1837
      %v1967 = vmul.f32 %v1715, %v1842
      %v1968 = vmul.f32 %v1716, %v1847
      %v1969 = vmul.f32 %v1717, %v1852
      %v1970 = vmul.f32 %v1718, %v1857
      %v1971 = vmul.f32 %v1719, %v1862
      %v1972 = vmul.f32 %v1720, %v1867
      %v1973 = vmul.f32 %v1721, %v1872
      %v1974 = vmul.f32 %v1722, %v1877
      %v1975 = vmul.f32 %v1723, %v1882
      %v1976 = vmul.f32 %v1724, %v1887
      %v1977 = vmul.f32 %v1725, %v1892
      %v1978 = vmul.f32 %v1726, %v1897
      %v1979 = vmul.f32 %v1727, %v1902
      %v1980 = vmul.f32 %v1728, %v1907
      %v1981 = vmul.f32 %v1729, %v1912
      %v1982 = vmul.f32 %v1730, %v1917
      %v1983 = vmul.f32 %v1731, %v1922
      %v1984 = vmul.f32 %v1732, %v1927
      %v1985 = vmul.f32 %v1733, %v1932
      %v1986 = vmul.f32 %v1734, %v1937
      %v1987 = vmul.f32 %v1735, %v1942
      %v1988 = vmul.f32 %v1736, %v1947
      %v1989 = vmul.f32 %v1737, %v1952
      %v1990 = vadd.f32 %v1954, %v1955
      %v1991 = vadd.f32 %v1990, %v1956
      %v1992 = vadd.f32 %v1991, %v1957
      %v1993 = vadd.f32 %v1992, %v1958
      %v1994 = vadd.f32 %v1993, %v1959
      %v1995 = vadd.f32 %v1994, %v1960
      %v1996 = vadd.f32 %v1995, %v1961
      %v1997 = vadd.f32 %v1996, %v1962
      %v1998 = vadd.f32 %v1997, %v1963
      %v1999 = vadd.f32 %v1998, %v1964
      %v2000 = vadd.f32 %v1999, %v1965
      %v2001 = vadd.f32 %v2000, %v1966
      %v2002 = vadd.f32 %v2001, %v1967
      %v2003 = vadd.f32 %v2002, %v1968
      %v2004 = vadd.f32 %v2003, %v1969
      %v2005 = vadd.f32 %v2004, %v1970
      %v2006 = vadd.f32 %v2005, %v1971
      %v2007 = vadd.f32 %v2006, %v1972
      %v2008 = vadd.f32 %v2007, %v1973
      %v2009 = vadd.f32 %v2008, %v1974
      %v2010 = vadd.f32 %v2009, %v1975
      %v2011 = vadd.f32 %v2010, %v1976
      %v2012 = vadd.f32 %v2011, %v1977
      %v2013 = vadd.f32 %v2012, %v1978
      %v2014 = vadd.f32 %v2013, %v1979
      %v2015 = vadd.f32 %v2014, %v1980
      %v2016 = vadd.f32 %v2015, %v1981
      %v2017 = vadd.f32 %v2016, %v1982
      %v2018 = vadd.f32 %v2017, %v1983
      %v2019 = vadd.f32 %v2018, %v1984
      %v2020 = vadd.f32 %v2019, %v1985
      %v2021 = vadd.f32 %v2020, %v1986
      %v2022 = vadd.f32 %v2021, %v1987
      %v2023 = vadd.f32 %v2022, %v1988
      %v2024 = vadd.f32 %v2023, %v1989
      %v2025 = vrot.slane %v2024, 4
      %v2026 = vadd.f32 %v2024, %v2025
      %v2027 = vrot.slane %v2026, 2
      %v2028 = vadd.f32 %v2026, %v2027
      %v2029 = vrot.slane %v2028, 1
      %v2030 = vadd.f32 %v2028, %v2029
      %2031 = vst [vmem:[%s193] sm:$0x1] %v2030
      %p2032 = scmp.lt.s32.totalorder %s15, 1
      %s2033 = scalar_select %p2032, %s15, 1
      %s2034 = scalar_lea.vmem %s4, %s2033
      // Predicated region
      $region37: #{vqa_conv_abstract_forward.2} parent=35 // pred_check
        %p2035 = pneg %p122
      $region38: #{vqa_conv_abstract_forward.2} parent=35 // pred_check_branch
        %2037 = sbr.rel (%p2035) target = $region40
      $region39: #{vqa_conv_abstract_forward.2} parent=35 // pred_region
        _
      $region40: #{vqa_conv_abstract_forward.2} parent=35 // pred_fallthru
        _
    $region36: #{vqa_conv_abstract_forward.2} parent=5 // pred_fallthru
      _
    %p2038 = scmp.le.s32.totalorder 2, %s10
    // Predicated region
    $region41: #{vqa_conv_abstract_forward.2} parent=5 // pred_check
      %p2039 = pneg %p2038
    $region42: #{vqa_conv_abstract_forward.2} parent=5 // pred_check_branch
      %2041 = sbr.rel (%p2039) target = $region44
    $region43: #{vqa_conv_abstract_forward.2} parent=5 // pred_region
      %s2042 = ssub.s32 %s10, 2
      // Predicated region
      $region45: #{vqa_conv_abstract_forward.2} parent=43 // pred_check
        %p2043 = pneg %p128
      $region46: #{vqa_conv_abstract_forward.2} parent=43 // pred_check_branch
        %2045 = sbr.rel (%p2043) target = $region48
      $region47: #{vqa_conv_abstract_forward.2} parent=43 // pred_region
        %p2046 = scmp.lt.s32.totalorder %s16, 1
        %s2047 = scalar_select %p2046, %s16, 1
        %s2048 = scalar_lea.vmem %s4, %s2047
      $region48: #{vqa_conv_abstract_forward.2} parent=43 // pred_fallthru
        _
    $region44: #{vqa_conv_abstract_forward.2} parent=5 // pred_fallthru
      _
  $region6: #{vqa_conv_abstract_forward.2} parent=0 // loop_footer
    %s14 = sadd.s32 1, %s10
  $region7: #{vqa_conv_abstract_forward.2} parent=0 // loop_footer_branch
    %9 = sbr.rel target = $region3
  $region8: #{vqa_conv_abstract_forward.2} parent=0 // loop_exit
    _

</llo_original>
